<compile_context>
chip_gen: v5e
topology: v5e:2x2
jax: 0.10.0
libtpu: 0.0.40
codegen_flags: <defaults>
</compile_context>

<pallas_src>
import functools

import jax
import jax.numpy as jnp
from jax.experimental import pallas as pl
from jax.experimental.pallas import tpu as pltpu


EMB = 32            # embedding_size
FEAT_IN = 133       # 33 + 33 + 44 + 23
FEAT_PAD = 256      # lane-dense padded feature width (round_up(133, 128))
H1 = 512
H2 = 512
H3 = 256
BN_EPS = 1e-5


def _round_up(n, m):
    return ((n + m - 1) // m) * m


def _cdiv(a, b):
    return (a + b - 1) // b


# ------------------------------- kernel -----------------------------------

def _mlp_kernel(x_ref,
                win_ref, bin_ref,
                w1_ref, b1_ref,
                w2_ref, b2_ref,
                w3_ref, b3_ref,
                w4_ref, b4_ref,
                out_ref):
    """One batch tile of the full DQN forward (eval-mode BN folded into W/b)."""

    def dense_relu(h, w_ref, b_ref):
        # bf16 inputs -> f32 MXU accumulation -> bias + ReLU in f32 -> bf16 out.
        # bf16 inter-layer activations halve vst/vld + spill traffic for the
        # [TB, 512] intermediates.
        y = jnp.dot(h, w_ref[...], preferred_element_type=jnp.float32)
        return jnp.maximum(y + b_ref[...], 0.0).astype(jnp.bfloat16)

    h = x_ref[...].astype(jnp.bfloat16)          # [TB, 256]  (cols 133: are zero)
    h = dense_relu(h, win_ref, bin_ref)          # fused 4 branches -> [TB, 128]
    h = dense_relu(h, w1_ref, b1_ref)            # hidden1 -> [TB, 512]
    h = dense_relu(h, w2_ref, b2_ref)            # hidden2 -> [TB, 512]
    h = dense_relu(h, w3_ref, b3_ref)            # output_layer[0:3] -> [TB, 256]
    out = jnp.dot(h, w4_ref[...],
                  preferred_element_type=jnp.float32) + b4_ref[...]
    out_ref[...] = out.astype(out_ref.dtype)     # [TB, OUT_PAD]


# ------------------------------- wrapper -----------------------------------

@functools.partial(jax.jit, static_argnames=("out_size", "tb"))
def dqn_latefusion_forward(x, params, out_size, tb=1024):
    """x: [B, 133] float32. params: dict from init_params(). Returns [B, out_size]."""
    B = x.shape[0]
    out_pad = params["w4"].shape[1]

    # Batch tiling:
    #  * big tiles (default tb=1024) so per-grid-step overhead is amortized;
    #  * >=2 tiles whenever the batch allows it so v7x's 2 TensorCores both
    #    get work under dimension_semantics=("parallel",);
    #  * tile size balanced over the real batch so padding waste is bounded
    #    by sublane rounding, not a fixed TB.
    n_tiles = max(_cdiv(B, tb), min(2, _cdiv(B, 8)))
    TB = _round_up(_cdiv(B, n_tiles), 8)
    B_pad = n_tiles * TB

    # Zero-pad batch tail and feature dim (133 -> 256). The padded x columns
    # hit zero rows of w_in, contributing exact zeros to the f32 accumulation.
    x = jnp.pad(x, ((0, B_pad - B), (0, FEAT_PAD - x.shape[1])))

    weights = (
        params["w_in"], params["b_in"],
        params["w1"], params["b1"],
        params["w2"], params["b2"],
        params["w3"], params["b3"],
        params["w4"], params["b4"],
    )

    def resident(arr):
        # Constant index_map -> block never changes across grid steps, stays
        # VMEM-resident; Buffered(1) drops the pointless second buffer.
        return pl.BlockSpec(arr.shape, lambda i: (0, 0),
                            pipeline_mode=pl.Buffered(1))

    in_specs = [pl.BlockSpec((TB, FEAT_PAD), lambda i: (i, 0))]
    in_specs += [resident(w) for w in weights]
    out_specs = pl.BlockSpec((TB, out_pad), lambda i: (i, 0))

    flops = 2 * B_pad * (FEAT_PAD * 4 * EMB + 4 * EMB * H1 + H1 * H2
                         + H2 * H3 + H3 * out_pad)
    bytes_accessed = (sum(int(w.size) * w.dtype.itemsize for w in weights)
                      + B_pad * FEAT_PAD * 4 + B_pad * out_pad * 4)

    out = pl.pallas_call(
        _mlp_kernel,
        out_shape=jax.ShapeDtypeStruct((B_pad, out_pad), jnp.float32),
        grid=(n_tiles,),
        in_specs=in_specs,
        out_specs=out_specs,
        compiler_params=pltpu.CompilerParams(
            dimension_semantics=("parallel",),
            # v5e's default scoped VMEM is 16 MiB; large TB tiles need more.
            # 32 MiB is within physical VMEM on every generation (incl. v7x).
            vmem_limit_bytes=32 * 1024 * 1024),
        cost_estimate=pl.CostEstimate(flops=flops, transcendentals=0,
                                      bytes_accessed=bytes_accessed),
    )(x, *weights)

    return out[:B, :out_size]


# ------------------------- parameter construction --------------------------

def _linear_params(key, fan_in, fan_out):
    kw, kb = jax.random.split(key)
    w = jax.random.normal(kw, (fan_in, fan_out), jnp.float32) * 0.05
    b = jax.random.normal(kb, (1, fan_out), jnp.float32) * 0.05
    return w, b


def _bn_params(key, n):
    kg, kb, km, kv = jax.random.split(key, 4)
    gamma = 1.0 + 0.1 * jax.random.normal(kg, (1, n), jnp.float32)
    beta = 0.1 * jax.random.normal(kb, (1, n), jnp.float32)
    mean = 0.1 * jax.random.normal(km, (1, n), jnp.float32)
    var = jax.random.uniform(kv, (1, n), jnp.float32, 0.5, 1.5)
    scale = gamma / jnp.sqrt(var + BN_EPS)
    shift = beta - mean * scale
    return scale, shift


def _fold_bn(w, b, scale, shift):
    # Linear(w, b) followed by eval-mode BN(scale, shift) == Linear(w*scale, b*scale+shift)
    return w * scale, b * scale + shift


def init_params(key, output_size):
    keys = jax.random.split(key, 16)

    # Branch linears: Linear(33,32), Linear(33,32), Linear(44,32), Linear(23,32)
    w_ap, b_ap = _linear_params(keys[0], 33, EMB)
    w_ar, b_ar = _linear_params(keys[1], 33, EMB)
    w_vw, b_vw = _linear_params(keys[2], 44, EMB)
    w_oi, b_oi = _linear_params(keys[3], 23, EMB)
    s_ap, t_ap = _bn_params(keys[4], EMB)
    s_ar, t_ar = _bn_params(keys[5], EMB)
    s_vw, t_vw = _bn_params(keys[6], EMB)
    s_oi, t_oi = _bn_params(keys[7], EMB)

    w_ap, b_ap = _fold_bn(w_ap, b_ap, s_ap, t_ap)
    w_ar, b_ar = _fold_bn(w_ar, b_ar, s_ar, t_ar)
    w_vw, b_vw = _fold_bn(w_vw, b_vw, s_vw, t_vw)
    w_oi, b_oi = _fold_bn(w_oi, b_oi, s_oi, t_oi)

    # Fuse the 4 disjoint-input branches into one block-diagonal matmul and
    # pad the input dim 133 -> 256 with zero rows (lane-dense x tile).
    w_in = jax.scipy.linalg.block_diag(w_ap, w_ar, w_vw, w_oi)      # [133, 128]
    w_in = jnp.zeros((FEAT_PAD, 4 * EMB), jnp.float32).at[:FEAT_IN].set(w_in)
    b_in = jnp.concatenate([b_ap, b_ar, b_vw, b_oi], axis=1)        # [1, 128]

    # hidden1: Linear(128, 512) + BN(512)
    w1, b1 = _linear_params(keys[8], 4 * EMB, H1)
    s1, t1 = _bn_params(keys[9], H1)
    w1, b1 = _fold_bn(w1, b1, s1, t1)
    # hidden2: Linear(512, 512) + BN(512)
    w2, b2 = _linear_params(keys[10], H1, H2)
    s2, t2 = _bn_params(keys[11], H2)
    w2, b2 = _fold_bn(w2, b2, s2, t2)
    # output_layer: Linear(512, 256) + BN(256) + ReLU + Linear(256, output_size)
    w3, b3 = _linear_params(keys[12], H2, H3)
    s3, t3 = _bn_params(keys[13], H3)
    w3, b3 = _fold_bn(w3, b3, s3, t3)
    w4, b4 = _linear_params(keys[14], H3, output_size)

    # Lane-dense padding of the final projection (unmasked vst in the kernel).
    out_pad = _round_up(output_size, 128)
    w4 = jnp.zeros((H3, out_pad), jnp.float32).at[:, :output_size].set(w4)
    b4 = jnp.zeros((1, out_pad), jnp.float32).at[:, :output_size].set(b4)

    def bf16(w):
        return w.astype(jnp.bfloat16)

    return dict(w_in=bf16(w_in), b_in=b_in,
                w1=bf16(w1), b1=b1,
                w2=bf16(w2), b2=b2,
                w3=bf16(w3), b3=b3,
                w4=bf16(w4), b4=b4)


# ------------------------------ reference ----------------------------------

def reference_forward(x, p, out_size):
    """Pure-JAX mirror of the torch module (branch-by-branch, eval-mode BN
    folded into the weights; bf16 weights/activations with f32 accumulation
    to match the kernel's MXU math)."""

    def dense_relu(h, w, b):
        y = jnp.dot(h.astype(jnp.bfloat16), w,
                    preferred_element_type=jnp.float32) + b
        return jnp.maximum(y, 0.0)

    x1 = dense_relu(x[:, 0:33],    p["w_in"][0:33,    0:32],   p["b_in"][:, 0:32])
    x2 = dense_relu(x[:, 33:66],   p["w_in"][33:66,   32:64],  p["b_in"][:, 32:64])
    x3 = dense_relu(x[:, 66:110],  p["w_in"][66:110,  64:96],  p["b_in"][:, 64:96])
    x4 = dense_relu(x[:, 110:133], p["w_in"][110:133, 96:128], p["b_in"][:, 96:128])
    h = jnp.concatenate([x1, x2, x3, x4], axis=1)
    h = dense_relu(h, p["w1"], p["b1"])
    h = dense_relu(h, p["w2"], p["b2"])
    h = dense_relu(h, p["w3"], p["b3"])
    out = jnp.dot(h.astype(jnp.bfloat16), p["w4"],
                  preferred_element_type=jnp.float32) + p["b4"]
    return out[:, :out_size]


if __name__ == "__main__":
    key = jax.random.PRNGKey(0)
    k_x, k_p = jax.random.split(key)

    BATCH = 8
    OUTPUT_SIZE = 16

    x = jax.random.normal(k_x, (BATCH, FEAT_IN), jnp.float32)   # [8, 133]
    params = init_params(k_p, OUTPUT_SIZE)

    out = jax.block_until_ready(
        dqn_latefusion_forward(x, params, out_size=OUTPUT_SIZE))
    ref = jax.block_until_ready(reference_forward(x, params, OUTPUT_SIZE))

    assert out.shape == (BATCH, OUTPUT_SIZE)
    assert jnp.allclose(out, ref, atol=2e-3, rtol=2e-3), "mismatch vs reference"
    print("KERNEL_OK")
</pallas_src>

<mosaic_0001>
module attributes {stable_mosaic.version = 11 : i64} {
  func.func @_mlp_kernel(%arg0: i32, %arg1: memref<8x256xf32, #tpu.memory_space<vmem>>, %arg2: memref<256x128xbf16, #tpu.memory_space<vmem>>, %arg3: memref<1x128xf32, #tpu.memory_space<vmem>>, %arg4: memref<128x512xbf16, #tpu.memory_space<vmem>>, %arg5: memref<1x512xf32, #tpu.memory_space<vmem>>, %arg6: memref<512x512xbf16, #tpu.memory_space<vmem>>, %arg7: memref<1x512xf32, #tpu.memory_space<vmem>>, %arg8: memref<512x256xbf16, #tpu.memory_space<vmem>>, %arg9: memref<1x256xf32, #tpu.memory_space<vmem>>, %arg10: memref<256x128xbf16, #tpu.memory_space<vmem>>, %arg11: memref<1x128xf32, #tpu.memory_space<vmem>>, %arg12: memref<8x128xf32, #tpu.memory_space<vmem>>) attributes {dimension_semantics = [#tpu.dimension_semantics<parallel>], iteration_bounds = array<i64: 1>, scalar_prefetch = 0 : i64, scratch_operands = 0 : i64, tpu.core_type = #tpu.core_type<tc>, window_params = [{transform_indices = @transform_0, window_bounds = array<i64: 8, 256>}, {pipeline_mode = #tpu.pipeline_mode<synchronous>, transform_indices = @transform_1, window_bounds = array<i64: 256, 128>}, {pipeline_mode = #tpu.pipeline_mode<synchronous>, transform_indices = @transform_2, window_bounds = array<i64: 1, 128>}, {pipeline_mode = #tpu.pipeline_mode<synchronous>, transform_indices = @transform_3, window_bounds = array<i64: 128, 512>}, {pipeline_mode = #tpu.pipeline_mode<synchronous>, transform_indices = @transform_4, window_bounds = array<i64: 1, 512>}, {pipeline_mode = #tpu.pipeline_mode<synchronous>, transform_indices = @transform_5, window_bounds = array<i64: 512, 512>}, {pipeline_mode = #tpu.pipeline_mode<synchronous>, transform_indices = @transform_6, window_bounds = array<i64: 1, 512>}, {pipeline_mode = #tpu.pipeline_mode<synchronous>, transform_indices = @transform_7, window_bounds = array<i64: 512, 256>}, {pipeline_mode = #tpu.pipeline_mode<synchronous>, transform_indices = @transform_8, window_bounds = array<i64: 1, 256>}, {pipeline_mode = #tpu.pipeline_mode<synchronous>, transform_indices = @transform_9, window_bounds = array<i64: 256, 128>}, {pipeline_mode = #tpu.pipeline_mode<synchronous>, transform_indices = @transform_10, window_bounds = array<i64: 1, 128>}, {transform_indices = @transform_11, window_bounds = array<i64: 8, 128>}]} {
    %c0 = arith.constant 0 : index
    %c0_0 = arith.constant 0 : index
    %0 = vector.load %arg1[%c0, %c0_0] : memref<8x256xf32, #tpu.memory_space<vmem>>, vector<8x256xf32>
    %1 = arith.truncf %0 : vector<8x256xf32> to vector<8x256xbf16>
    %c0_1 = arith.constant 0 : index
    %c0_2 = arith.constant 0 : index
    %2 = vector.load %arg2[%c0_1, %c0_2] : memref<256x128xbf16, #tpu.memory_space<vmem>>, vector<256x128xbf16>
    %cst = arith.constant dense<0.000000e+00> : vector<8x128xf32>
    %3 = tpu.matmul %1, %2, %cst {dimension_numbers = #tpu.dot_dimension_numbers<[1], [0], [0], [1], [0, 0, 1, 1], [], []>} : vector<8x256xbf16>, vector<256x128xbf16>, vector<8x128xf32> -> vector<8x128xf32>
    %c0_3 = arith.constant 0 : index
    %c0_4 = arith.constant 0 : index
    %4 = vector.load %arg3[%c0_3, %c0_4] : memref<1x128xf32, #tpu.memory_space<vmem>>, vector<1x128xf32>
    %5 = vector.broadcast %4 : vector<1x128xf32> to vector<8x128xf32>
    %6 = arith.addf %3, %5 : vector<8x128xf32>
    %cst_5 = arith.constant 0.000000e+00 : f32
    %7 = vector.broadcast %cst_5 : f32 to vector<8x128xf32>
    %8 = arith.maximumf %6, %7 : vector<8x128xf32>
    %9 = arith.truncf %8 : vector<8x128xf32> to vector<8x128xbf16>
    %c0_6 = arith.constant 0 : index
    %c0_7 = arith.constant 0 : index
    %10 = vector.load %arg4[%c0_6, %c0_7] : memref<128x512xbf16, #tpu.memory_space<vmem>>, vector<128x512xbf16>
    %cst_8 = arith.constant dense<0.000000e+00> : vector<8x512xf32>
    %11 = tpu.matmul %9, %10, %cst_8 {dimension_numbers = #tpu.dot_dimension_numbers<[1], [0], [0], [1], [0, 0, 1, 1], [], []>} : vector<8x128xbf16>, vector<128x512xbf16>, vector<8x512xf32> -> vector<8x512xf32>
    %c0_9 = arith.constant 0 : index
    %c0_10 = arith.constant 0 : index
    %12 = vector.load %arg5[%c0_9, %c0_10] : memref<1x512xf32, #tpu.memory_space<vmem>>, vector<1x512xf32>
    %13 = vector.broadcast %12 : vector<1x512xf32> to vector<8x512xf32>
    %14 = arith.addf %11, %13 : vector<8x512xf32>
    %cst_11 = arith.constant 0.000000e+00 : f32
    %15 = vector.broadcast %cst_11 : f32 to vector<8x512xf32>
    %16 = arith.maximumf %14, %15 : vector<8x512xf32>
    %17 = arith.truncf %16 : vector<8x512xf32> to vector<8x512xbf16>
    %c0_12 = arith.constant 0 : index
    %c0_13 = arith.constant 0 : index
    %18 = vector.load %arg6[%c0_12, %c0_13] : memref<512x512xbf16, #tpu.memory_space<vmem>>, vector<512x512xbf16>
    %cst_14 = arith.constant dense<0.000000e+00> : vector<8x512xf32>
    %19 = tpu.matmul %17, %18, %cst_14 {dimension_numbers = #tpu.dot_dimension_numbers<[1], [0], [0], [1], [0, 0, 1, 1], [], []>} : vector<8x512xbf16>, vector<512x512xbf16>, vector<8x512xf32> -> vector<8x512xf32>
    %c0_15 = arith.constant 0 : index
    %c0_16 = arith.constant 0 : index
    %20 = vector.load %arg7[%c0_15, %c0_16] : memref<1x512xf32, #tpu.memory_space<vmem>>, vector<1x512xf32>
    %21 = vector.broadcast %20 : vector<1x512xf32> to vector<8x512xf32>
    %22 = arith.addf %19, %21 : vector<8x512xf32>
    %cst_17 = arith.constant 0.000000e+00 : f32
    %23 = vector.broadcast %cst_17 : f32 to vector<8x512xf32>
    %24 = arith.maximumf %22, %23 : vector<8x512xf32>
    %25 = arith.truncf %24 : vector<8x512xf32> to vector<8x512xbf16>
    %c0_18 = arith.constant 0 : index
    %c0_19 = arith.constant 0 : index
    %26 = vector.load %arg8[%c0_18, %c0_19] : memref<512x256xbf16, #tpu.memory_space<vmem>>, vector<512x256xbf16>
    %cst_20 = arith.constant dense<0.000000e+00> : vector<8x256xf32>
    %27 = tpu.matmul %25, %26, %cst_20 {dimension_numbers = #tpu.dot_dimension_numbers<[1], [0], [0], [1], [0, 0, 1, 1], [], []>} : vector<8x512xbf16>, vector<512x256xbf16>, vector<8x256xf32> -> vector<8x256xf32>
    %c0_21 = arith.constant 0 : index
    %c0_22 = arith.constant 0 : index
    %28 = vector.load %arg9[%c0_21, %c0_22] : memref<1x256xf32, #tpu.memory_space<vmem>>, vector<1x256xf32>
    %29 = vector.broadcast %28 : vector<1x256xf32> to vector<8x256xf32>
    %30 = arith.addf %27, %29 : vector<8x256xf32>
    %cst_23 = arith.constant 0.000000e+00 : f32
    %31 = vector.broadcast %cst_23 : f32 to vector<8x256xf32>
    %32 = arith.maximumf %30, %31 : vector<8x256xf32>
    %33 = arith.truncf %32 : vector<8x256xf32> to vector<8x256xbf16>
    %c0_24 = arith.constant 0 : index
    %c0_25 = arith.constant 0 : index
    %34 = vector.load %arg10[%c0_24, %c0_25] : memref<256x128xbf16, #tpu.memory_space<vmem>>, vector<256x128xbf16>
    %cst_26 = arith.constant dense<0.000000e+00> : vector<8x128xf32>
    %35 = tpu.matmul %33, %34, %cst_26 {dimension_numbers = #tpu.dot_dimension_numbers<[1], [0], [0], [1], [0, 0, 1, 1], [], []>} : vector<8x256xbf16>, vector<256x128xbf16>, vector<8x128xf32> -> vector<8x128xf32>
    %c0_27 = arith.constant 0 : index
    %c0_28 = arith.constant 0 : index
    %36 = vector.load %arg11[%c0_27, %c0_28] : memref<1x128xf32, #tpu.memory_space<vmem>>, vector<1x128xf32>
    %37 = vector.broadcast %36 : vector<1x128xf32> to vector<8x128xf32>
    %38 = arith.addf %35, %37 : vector<8x128xf32>
    %c0_29 = arith.constant 0 : index
    %c0_30 = arith.constant 0 : index
    %39 = vector.load %arg12[%c0_29, %c0_30] : memref<8x128xf32, #tpu.memory_space<vmem>>, vector<8x128xf32>
    tpu.vector_store %arg12[%c0_29, %c0_30], %38 {strides = array<i32>} : memref<8x128xf32, #tpu.memory_space<vmem>>, vector<8x128xf32>,
    return
  }
  func.func @transform_0(%arg0: i32) -> (i32, i32) {
    %c0_i32 = arith.constant 0 : i32
    %c0_i32_0 = arith.constant 0 : i32
    return %arg0, %c0_i32 : i32, i32
  }
  func.func @transform_1(%arg0: i32) -> (i32, i32) {
    %c0_i32 = arith.constant 0 : i32
    %c0_i32_0 = arith.constant 0 : i32
    %c0_i32_1 = arith.constant 0 : i32
    return %c0_i32, %c0_i32_0 : i32, i32
  }
  func.func @transform_2(%arg0: i32) -> (i32, i32) {
    %c0_i32 = arith.constant 0 : i32
    %c0_i32_0 = arith.constant 0 : i32
    %c0_i32_1 = arith.constant 0 : i32
    return %c0_i32, %c0_i32_0 : i32, i32
  }
  func.func @transform_3(%arg0: i32) -> (i32, i32) {
    %c0_i32 = arith.constant 0 : i32
    %c0_i32_0 = arith.constant 0 : i32
    %c0_i32_1 = arith.constant 0 : i32
    return %c0_i32, %c0_i32_0 : i32, i32
  }
  func.func @transform_4(%arg0: i32) -> (i32, i32) {
    %c0_i32 = arith.constant 0 : i32
    %c0_i32_0 = arith.constant 0 : i32
    %c0_i32_1 = arith.constant 0 : i32
    return %c0_i32, %c0_i32_0 : i32, i32
  }
  func.func @transform_5(%arg0: i32) -> (i32, i32) {
    %c0_i32 = arith.constant 0 : i32
    %c0_i32_0 = arith.constant 0 : i32
    %c0_i32_1 = arith.constant 0 : i32
    return %c0_i32, %c0_i32_0 : i32, i32
  }
  func.func @transform_6(%arg0: i32) -> (i32, i32) {
    %c0_i32 = arith.constant 0 : i32
    %c0_i32_0 = arith.constant 0 : i32
    %c0_i32_1 = arith.constant 0 : i32
    return %c0_i32, %c0_i32_0 : i32, i32
  }
  func.func @transform_7(%arg0: i32) -> (i32, i32) {
    %c0_i32 = arith.constant 0 : i32
    %c0_i32_0 = arith.constant 0 : i32
    %c0_i32_1 = arith.constant 0 : i32
    return %c0_i32, %c0_i32_0 : i32, i32
  }
  func.func @transform_8(%arg0: i32) -> (i32, i32) {
    %c0_i32 = arith.constant 0 : i32
    %c0_i32_0 = arith.constant 0 : i32
    %c0_i32_1 = arith.constant 0 : i32
    return %c0_i32, %c0_i32_0 : i32, i32
  }
  func.func @transform_9(%arg0: i32) -> (i32, i32) {
    %c0_i32 = arith.constant 0 : i32
    %c0_i32_0 = arith.constant 0 : i32
    %c0_i32_1 = arith.constant 0 : i32
    return %c0_i32, %c0_i32_0 : i32, i32
  }
  func.func @transform_10(%arg0: i32) -> (i32, i32) {
    %c0_i32 = arith.constant 0 : i32
    %c0_i32_0 = arith.constant 0 : i32
    %c0_i32_1 = arith.constant 0 : i32
    return %c0_i32, %c0_i32_0 : i32, i32
  }
  func.func @transform_11(%arg0: i32) -> (i32, i32) {
    %c0_i32 = arith.constant 0 : i32
    %c0_i32_0 = arith.constant 0 : i32
    return %arg0, %c0_i32 : i32, i32
  }
}

</mosaic_0001>

<llo_original>
// kernel: dqn_latefusion_forward.1
$region0: #{dqn_latefusion_forward.1}
  #allocation0 [shape = 'u32[]', space=smem, size = 0x4, offset = 0x4, fixed_abs, tag = 'smem constant byte address 0x4 - core index']
  #allocation1 [shape = 'u32[72,128]{1,0:T(1,128)}', space=vmem, size = 0x9000, scoped, tag = 'internal scratch']
  %s0 = inlined_call_operand.vmem [shape: f32[8,256], index: 0, kind: input, shape index: {}]
  %s1 = inlined_call_operand.hbm [shape: bf16[256,128], index: 1, kind: input, shape index: {}]
  %s2 = inlined_call_operand.vmem [shape: f32[1,128], index: 2, kind: input, shape index: {}]
  %s3 = inlined_call_operand.hbm [shape: bf16[128,512], index: 3, kind: input, shape index: {}]
  %s4 = inlined_call_operand.vmem [shape: f32[1,512], index: 4, kind: input, shape index: {}]
  %s5 = inlined_call_operand.hbm [shape: bf16[512,512], index: 5, kind: input, shape index: {}]
  %s6 = inlined_call_operand.vmem [shape: f32[1,512], index: 6, kind: input, shape index: {}]
  %s7 = inlined_call_operand.hbm [shape: bf16[512,256], index: 7, kind: input, shape index: {}]
  %s8 = inlined_call_operand.vmem [shape: f32[1,256], index: 8, kind: input, shape index: {}]
  %s9 = inlined_call_operand.hbm [shape: bf16[256,128], index: 9, kind: input, shape index: {}]
  %s10 = inlined_call_operand.vmem [shape: f32[1,128], index: 10, kind: input, shape index: {}]
  %s11 = inlined_call_operand.hbm [shape: f32[8,128], index: 11, kind: output, shape index: {}]
  %s12 = sld [smem:[#allocation0]]
  $region74: #{dqn_latefusion_forward.1} parent=0
    _
  %s14 = ssub.s32 1, %s12
  %s15 = scalar_select 0, %s14, %s12
  $region1: #{dqn_latefusion_forward.1} parent=0
    #allocation2 [shape = 'u8[65536]{0}', space=vmem, size = 0x10000, scoped, tag = 'input window, operand 1, single buffered']
    #allocation3 [shape = 's32[1]{0}', space=sflag, size = 0x4, scoped, tag = 'scoped memory for dqn_latefusion_forward.1']
    #allocation4 [shape = 's32[1]{0}', space=sflag, size = 0x4, scoped, tag = 'scoped memory for dqn_latefusion_forward.1']
    #allocation5 [shape = 'u8[131072]{0}', space=vmem, size = 0x20000, scoped, tag = 'input window, operand 3, single buffered']
    #allocation6 [shape = 's32[1]{0}', space=sflag, size = 0x4, scoped, tag = 'scoped memory for dqn_latefusion_forward.1']
    #allocation7 [shape = 'u8[524288]{0}', space=vmem, size = 0x80000, scoped, tag = 'input window, operand 5, single buffered']
    #allocation8 [shape = 'u8[262144]{0}', space=vmem, size = 0x40000, scoped, tag = 'input window, operand 7, single buffered']
    #allocation9 [shape = 's32[1]{0}', space=sflag, size = 0x4, scoped, tag = 'scoped memory for dqn_latefusion_forward.1']
    #allocation10 [shape = 'u8[65536]{0}', space=vmem, size = 0x10000, scoped, tag = 'input window, operand 9, single buffered']
    #allocation11 [shape = 'u8[4096]{0}', space=vmem, size = 0x1000, scoped, tag = 'output window, operand 0, single buffered']
    %16 = vsyncpa [#allocation3], 0
    %17 = vsyncpa [#allocation6], 0
    %18 = vsyncpa [#allocation9], 0
    %19 = vsyncpa [#allocation4], 0
    // Predicated region
    $region2: #{dqn_latefusion_forward.1} parent=1 // pred_check
      _
    $region3: #{dqn_latefusion_forward.1} parent=1 // pred_check_branch
      %21 = sbr.rel (0) target = $region5
    $region4: #{dqn_latefusion_forward.1} parent=1 // pred_region
      _
    $region5: #{dqn_latefusion_forward.1} parent=1 // pred_fallthru
      _
    // Predicated region
    $region6: #{dqn_latefusion_forward.1} parent=1 // pred_check
      _
    $region7: #{dqn_latefusion_forward.1} parent=1 // pred_check_branch
      %23 = sbr.rel (0) target = $region9
    $region8: #{dqn_latefusion_forward.1} parent=1 // pred_region
      %25 = vsyncadd [#allocation3], 0
      %s26 = sshll.u32 %s1, 4
      %s27 = int_to_ptr.hbm [resolvable:$true] %s26
      %s28 = sshll.u32 [#allocation2], 4
      %s29 = int_to_ptr.vmem [resolvable:$true] %s28
      %34 = dma.hbm_to_vmem [thread:$0]  %s27, 2048, %s29, [#allocation3], 64, 64, 4
    $region9: #{dqn_latefusion_forward.1} parent=1 // pred_fallthru
      _
    // Predicated region
    $region10: #{dqn_latefusion_forward.1} parent=1 // pred_check
      _
    $region11: #{dqn_latefusion_forward.1} parent=1 // pred_check_branch
      %36 = sbr.rel (0) target = $region13
    $region12: #{dqn_latefusion_forward.1} parent=1 // pred_region
      _
    $region13: #{dqn_latefusion_forward.1} parent=1 // pred_fallthru
      _
    // Predicated region
    $region14: #{dqn_latefusion_forward.1} parent=1 // pred_check
      _
    $region15: #{dqn_latefusion_forward.1} parent=1 // pred_check_branch
      %38 = sbr.rel (0) target = $region17
    $region16: #{dqn_latefusion_forward.1} parent=1 // pred_region
      %40 = vsyncadd [#allocation6], 0
      %s41 = sshll.u32 %s3, 4
      %s42 = int_to_ptr.hbm [resolvable:$true] %s41
      %s43 = sshll.u32 [#allocation5], 4
      %s44 = int_to_ptr.vmem [resolvable:$true] %s43
      %49 = dma.hbm_to_vmem [thread:$0]  %s42, 4096, %s44, [#allocation6], 256, 256, 16
    $region17: #{dqn_latefusion_forward.1} parent=1 // pred_fallthru
      _
    // Predicated region
    $region18: #{dqn_latefusion_forward.1} parent=1 // pred_check
      _
    $region19: #{dqn_latefusion_forward.1} parent=1 // pred_check_branch
      %51 = sbr.rel (0) target = $region21
    $region20: #{dqn_latefusion_forward.1} parent=1 // pred_region
      _
    $region21: #{dqn_latefusion_forward.1} parent=1 // pred_fallthru
      _
    // Predicated region
    $region22: #{dqn_latefusion_forward.1} parent=1 // pred_check
      _
    $region23: #{dqn_latefusion_forward.1} parent=1 // pred_check_branch
      %53 = sbr.rel (0) target = $region25
    $region24: #{dqn_latefusion_forward.1} parent=1 // pred_region
      %55 = vsyncadd [#allocation6], 0
      %s56 = sshll.u32 %s5, 4
      %s57 = int_to_ptr.hbm [resolvable:$true] %s56
      %s58 = sshll.u32 [#allocation7], 4
      %s59 = int_to_ptr.vmem [resolvable:$true] %s58
      %64 = dma.hbm_to_vmem [thread:$0]  %s57, 16384, %s59, [#allocation6], 256, 256, 16
    $region25: #{dqn_latefusion_forward.1} parent=1 // pred_fallthru
      _
    // Predicated region
    $region26: #{dqn_latefusion_forward.1} parent=1 // pred_check
      _
    $region27: #{dqn_latefusion_forward.1} parent=1 // pred_check_branch
      %66 = sbr.rel (0) target = $region29
    $region28: #{dqn_latefusion_forward.1} parent=1 // pred_region
      _
    $region29: #{dqn_latefusion_forward.1} parent=1 // pred_fallthru
      _
    // Predicated region
    $region30: #{dqn_latefusion_forward.1} parent=1 // pred_check
      _
    $region31: #{dqn_latefusion_forward.1} parent=1 // pred_check_branch
      %68 = sbr.rel (0) target = $region33
    $region32: #{dqn_latefusion_forward.1} parent=1 // pred_region
      %70 = vsyncadd [#allocation9], 0
      %s71 = sshll.u32 %s7, 4
      %s72 = int_to_ptr.hbm [resolvable:$true] %s71
      %s73 = sshll.u32 [#allocation8], 4
      %s74 = int_to_ptr.vmem [resolvable:$true] %s73
      %79 = dma.hbm_to_vmem [thread:$0]  %s72, 8192, %s74, [#allocation9], 128, 128, 8
    $region33: #{dqn_latefusion_forward.1} parent=1 // pred_fallthru
      _
    // Predicated region
    $region34: #{dqn_latefusion_forward.1} parent=1 // pred_check
      _
    $region35: #{dqn_latefusion_forward.1} parent=1 // pred_check_branch
      %81 = sbr.rel (0) target = $region37
    $region36: #{dqn_latefusion_forward.1} parent=1 // pred_region
      _
    $region37: #{dqn_latefusion_forward.1} parent=1 // pred_fallthru
      _
    // Predicated region
    $region38: #{dqn_latefusion_forward.1} parent=1 // pred_check
      _
    $region39: #{dqn_latefusion_forward.1} parent=1 // pred_check_branch
      %83 = sbr.rel (0) target = $region41
    $region40: #{dqn_latefusion_forward.1} parent=1 // pred_region
      %85 = vsyncadd [#allocation9], 0
      %s86 = sshll.u32 %s9, 4
      %s87 = int_to_ptr.hbm [resolvable:$true] %s86
      %s88 = sshll.u32 [#allocation10], 4
      %s89 = int_to_ptr.vmem [resolvable:$true] %s88
      %94 = dma.hbm_to_vmem [thread:$0]  %s87, 2048, %s89, [#allocation9], 64, 64, 4
    $region41: #{dqn_latefusion_forward.1} parent=1 // pred_fallthru
      _
    // Predicated region
    $region42: #{dqn_latefusion_forward.1} parent=1 // pred_check
      _
    $region43: #{dqn_latefusion_forward.1} parent=1 // pred_check_branch
      %96 = sbr.rel (0) target = $region45
    $region44: #{dqn_latefusion_forward.1} parent=1 // pred_region
      _
    $region45: #{dqn_latefusion_forward.1} parent=1 // pred_fallthru
      _
    // Predicated region
    $region46: #{dqn_latefusion_forward.1} parent=1 // pred_check
      _
    $region47: #{dqn_latefusion_forward.1} parent=1 // pred_check_branch
      %98 = sbr.rel (0) target = $region49
    $region48: #{dqn_latefusion_forward.1} parent=1 // pred_region
      %100 = dma.done [#allocation3], 2048
    $region49: #{dqn_latefusion_forward.1} parent=1 // pred_fallthru
      _
    // Predicated region
    $region50: #{dqn_latefusion_forward.1} parent=1 // pred_check
      _
    $region51: #{dqn_latefusion_forward.1} parent=1 // pred_check_branch
      %102 = sbr.rel (0) target = $region53
    $region52: #{dqn_latefusion_forward.1} parent=1 // pred_region
      %104 = dma.done [#allocation6], 4096
    $region53: #{dqn_latefusion_forward.1} parent=1 // pred_fallthru
      _
    // Predicated region
    $region54: #{dqn_latefusion_forward.1} parent=1 // pred_check
      _
    $region55: #{dqn_latefusion_forward.1} parent=1 // pred_check_branch
      %106 = sbr.rel (0) target = $region57
    $region56: #{dqn_latefusion_forward.1} parent=1 // pred_region
      %108 = dma.done [#allocation6], 16384
    $region57: #{dqn_latefusion_forward.1} parent=1 // pred_fallthru
      _
    // Predicated region
    $region58: #{dqn_latefusion_forward.1} parent=1 // pred_check
      _
    $region59: #{dqn_latefusion_forward.1} parent=1 // pred_check_branch
      %110 = sbr.rel (0) target = $region61
    $region60: #{dqn_latefusion_forward.1} parent=1 // pred_region
      %112 = dma.done [#allocation9], 8192
    $region61: #{dqn_latefusion_forward.1} parent=1 // pred_fallthru
      _
    // Predicated region
    $region62: #{dqn_latefusion_forward.1} parent=1 // pred_check
      _
    $region63: #{dqn_latefusion_forward.1} parent=1 // pred_check_branch
      %114 = sbr.rel (0) target = $region65
    $region64: #{dqn_latefusion_forward.1} parent=1 // pred_region
      %116 = dma.done [#allocation9], 2048
    $region65: #{dqn_latefusion_forward.1} parent=1 // pred_fallthru
      _
    %v117 = vld [vmem:[%s0] sm:$0xff]
    %v118 = vld [vmem:[%s0 + $0x8] sm:$0xff]
    %v119 = vpack.c.bf16 %v117, %v117
    %v120 = vpack.c.bf16 %v118, %v118
    %v121 = vld [vmem:[#allocation2] sm:$0xf]
    %v122 = vld [vmem:[#allocation2 + $0x4] sm:$0xf]
    %v123 = vld [vmem:[#allocation2 + $0x8] sm:$0xf]
    %v124 = vld [vmem:[#allocation2 + $0xc] sm:$0xf]
    %v125 = vld [vmem:[#allocation2 + $0x10] sm:$0xf]
    %v126 = vld [vmem:[#allocation2 + $0x14] sm:$0xf]
    %v127 = vld [vmem:[#allocation2 + $0x18] sm:$0xf]
    %v128 = vld [vmem:[#allocation2 + $0x1c] sm:$0xf]
    %v129 = vld [vmem:[#allocation2 + $0x20] sm:$0xf]
    %v130 = vld [vmem:[#allocation2 + $0x24] sm:$0xf]
    %v131 = vld [vmem:[#allocation2 + $0x28] sm:$0xf]
    %v132 = vld [vmem:[#allocation2 + $0x2c] sm:$0xf]
    %v133 = vld [vmem:[#allocation2 + $0x30] sm:$0xf]
    %v134 = vld [vmem:[#allocation2 + $0x34] sm:$0xf]
    %v135 = vld [vmem:[#allocation2 + $0x38] sm:$0xf]
    %v136 = vld [vmem:[#allocation2 + $0x3c] sm:$0xf]
    %v137 = vld [vmem:[#allocation2 + $0x40] sm:$0xf]
    %v138 = vld [vmem:[#allocation2 + $0x44] sm:$0xf]
    %v139 = vld [vmem:[#allocation2 + $0x48] sm:$0xf]
    %v140 = vld [vmem:[#allocation2 + $0x4c] sm:$0xf]
    %v141 = vld [vmem:[#allocation2 + $0x50] sm:$0xf]
    %v142 = vld [vmem:[#allocation2 + $0x54] sm:$0xf]
    %v143 = vld [vmem:[#allocation2 + $0x58] sm:$0xf]
    %v144 = vld [vmem:[#allocation2 + $0x5c] sm:$0xf]
    %v145 = vld [vmem:[#allocation2 + $0x60] sm:$0xf]
    %v146 = vld [vmem:[#allocation2 + $0x64] sm:$0xf]
    %v147 = vld [vmem:[#allocation2 + $0x68] sm:$0xf]
    %v148 = vld [vmem:[#allocation2 + $0x6c] sm:$0xf]
    %v149 = vld [vmem:[#allocation2 + $0x70] sm:$0xf]
    %v150 = vld [vmem:[#allocation2 + $0x74] sm:$0xf]
    %v151 = vld [vmem:[#allocation2 + $0x78] sm:$0xf]
    %v152 = vld [vmem:[#allocation2 + $0x7c] sm:$0xf]
    %v153 = vld [vmem:[%s2] sm:$0x1]
    %v155 = vperm.slane %v153, 0
    %v189 = vunpack.c.l.b16 %v121
    %v190 = vunpack.c.l.b16 %v122
    %v191 = vunpack.c.l.b16 %v123
    %v192 = vunpack.c.l.b16 %v124
    %v193 = vunpack.c.l.b16 %v125
    %v194 = vunpack.c.l.b16 %v126
    %v195 = vunpack.c.l.b16 %v127
    %v196 = vunpack.c.l.b16 %v128
    %v197 = vunpack.c.l.b16 %v129
    %v198 = vunpack.c.l.b16 %v130
    %v199 = vunpack.c.l.b16 %v131
    %v200 = vunpack.c.l.b16 %v132
    %v201 = vunpack.c.l.b16 %v133
    %v202 = vunpack.c.l.b16 %v134
    %v203 = vunpack.c.l.b16 %v135
    %v204 = vunpack.c.l.b16 %v136
    %v205 = vunpack.c.l.b16 %v137
    %v206 = vunpack.c.l.b16 %v138
    %v207 = vunpack.c.l.b16 %v139
    %v208 = vunpack.c.l.b16 %v140
    %v209 = vunpack.c.l.b16 %v141
    %v210 = vunpack.c.l.b16 %v142
    %v211 = vunpack.c.l.b16 %v143
    %v212 = vunpack.c.l.b16 %v144
    %v213 = vunpack.c.l.b16 %v145
    %v214 = vunpack.c.l.b16 %v146
    %v215 = vunpack.c.l.b16 %v147
    %v216 = vunpack.c.l.b16 %v148
    %v217 = vunpack.c.l.b16 %v149
    %v218 = vunpack.c.l.b16 %v150
    %v219 = vunpack.c.l.b16 %v151
    %v220 = vunpack.c.l.b16 %v152
    %v221 = vpack.c.b16 %v190, %v189
    %v222 = vpack.c.b16 %v192, %v191
    %v223 = vpack.c.b16 %v194, %v193
    %v224 = vpack.c.b16 %v196, %v195
    %v225 = vpack.c.b16 %v198, %v197
    %v226 = vpack.c.b16 %v200, %v199
    %v227 = vpack.c.b16 %v202, %v201
    %v228 = vpack.c.b16 %v204, %v203
    %v229 = vpack.c.b16 %v206, %v205
    %v230 = vpack.c.b16 %v208, %v207
    %v231 = vpack.c.b16 %v210, %v209
    %v232 = vpack.c.b16 %v212, %v211
    %v233 = vpack.c.b16 %v214, %v213
    %v234 = vpack.c.b16 %v216, %v215
    %v235 = vpack.c.b16 %v218, %v217
    %v236 = vpack.c.b16 %v220, %v219
    %253 = vmatpush.bf16.msra.mxu0 %v228
    %254 = vmatpush.bf16.msra.mxu0 %v227
    %255 = vmatpush.bf16.msra.mxu0 %v226
    %256 = vmatpush.bf16.msra.mxu0 %v225
    %257 = vmatpush.bf16.msra.mxu0 %v224
    %258 = vmatpush.bf16.msra.mxu0 %v223
    %259 = vmatpush.bf16.msra.mxu0 %v222
    %260 = vmatpush.bf16.msra.mxu0 %v221
    %261 = vmatmul.bf16.gmra.mxu0 %v119
    %v262 = vpop.f32.mrf.mxu0
    %v263 = vadd.f32 %v155, %v262
    %v264 = vpop.f32.mrf.mxu0
    %265 = vdwg.mxu0
    %266 = vmatpush.bf16.msra.mxu0 %v236
    %267 = vmatpush.bf16.msra.mxu0 %v235
    %268 = vmatpush.bf16.msra.mxu0 %v234
    %269 = vmatpush.bf16.msra.mxu0 %v233
    %270 = vmatpush.bf16.msra.mxu0 %v232
    %271 = vmatpush.bf16.msra.mxu0 %v231
    %272 = vmatpush.bf16.msra.mxu0 %v230
    %273 = vmatpush.bf16.msra.mxu0 %v229
    %274 = vmatmul.bf16.gmra.mxu0 %v120
    %v275 = vpop.f32.mrf.mxu0
    %v276 = vadd.f32 %v263, %v275
    %v277 = vpop.f32.mrf.mxu0
    %278 = vdwg.mxu0
    %v279 = vmax.f32 %v276, 0.0
    %v280 = vpack.c.bf16 %v279, %v279
    %v281 = vld [vmem:[#allocation5] sm:$0xff]
    %v282 = vld [vmem:[#allocation5 + $0x8] sm:$0xff]
    %v283 = vld [vmem:[#allocation5 + $0x10] sm:$0xff]
    %v284 = vld [vmem:[#allocation5 + $0x18] sm:$0xff]
    %v285 = vld [vmem:[#allocation5 + $0x20] sm:$0xff]
    %v286 = vld [vmem:[#allocation5 + $0x28] sm:$0xff]
    %v287 = vld [vmem:[#allocation5 + $0x30] sm:$0xff]
    %v288 = vld [vmem:[#allocation5 + $0x38] sm:$0xff]
    %v289 = vld [vmem:[#allocation5 + $0x40] sm:$0xff]
    %v290 = vld [vmem:[#allocation5 + $0x48] sm:$0xff]
    %v291 = vld [vmem:[#allocation5 + $0x50] sm:$0xff]
    %v292 = vld [vmem:[#allocation5 + $0x58] sm:$0xff]
    %v293 = vld [vmem:[#allocation5 + $0x60] sm:$0xff]
    %v294 = vld [vmem:[#allocation5 + $0x68] sm:$0xff]
    %v295 = vld [vmem:[#allocation5 + $0x70] sm:$0xff]
    %v296 = vld [vmem:[#allocation5 + $0x78] sm:$0xff]
    %v297 = vld [vmem:[#allocation5 + $0x80] sm:$0xff]
    %v298 = vld [vmem:[#allocation5 + $0x88] sm:$0xff]
    %v299 = vld [vmem:[#allocation5 + $0x90] sm:$0xff]
    %v300 = vld [vmem:[#allocation5 + $0x98] sm:$0xff]
    %v301 = vld [vmem:[#allocation5 + $0xa0] sm:$0xff]
    %v302 = vld [vmem:[#allocation5 + $0xa8] sm:$0xff]
    %v303 = vld [vmem:[#allocation5 + $0xb0] sm:$0xff]
    %v304 = vld [vmem:[#allocation5 + $0xb8] sm:$0xff]
    %v305 = vld [vmem:[#allocation5 + $0xc0] sm:$0xff]
    %v306 = vld [vmem:[#allocation5 + $0xc8] sm:$0xff]
    %v307 = vld [vmem:[#allocation5 + $0xd0] sm:$0xff]
    %v308 = vld [vmem:[#allocation5 + $0xd8] sm:$0xff]
    %v309 = vld [vmem:[#allocation5 + $0xe0] sm:$0xff]
    %v310 = vld [vmem:[#allocation5 + $0xe8] sm:$0xff]
    %v311 = vld [vmem:[#allocation5 + $0xf0] sm:$0xff]
    %v312 = vld [vmem:[#allocation5 + $0xf8] sm:$0xff]
    %v313 = vld [vmem:[%s4] sm:$0xf]
    %v315 = vperm.slane %v313, 0
    %v316 = vperm.slane %v313, 1
    %v317 = vperm.slane %v313, 2
    %v318 = vperm.slane %v313, 3
    %v355 = vunpack.c.l.b16 %v281
    %v356 = vunpack.c.h.b16 %v281
    %v357 = vunpack.c.l.b16 %v282
    %v358 = vunpack.c.h.b16 %v282
    %v359 = vunpack.c.l.b16 %v283
    %v360 = vunpack.c.h.b16 %v283
    %v361 = vunpack.c.l.b16 %v284
    %v362 = vunpack.c.h.b16 %v284
    %v363 = vunpack.c.l.b16 %v285
    %v364 = vunpack.c.h.b16 %v285
    %v365 = vunpack.c.l.b16 %v286
    %v366 = vunpack.c.h.b16 %v286
    %v367 = vunpack.c.l.b16 %v287
    %v368 = vunpack.c.h.b16 %v287
    %v369 = vunpack.c.l.b16 %v288
    %v370 = vunpack.c.h.b16 %v288
    %v371 = vunpack.c.l.b16 %v289
    %v372 = vunpack.c.h.b16 %v289
    %v373 = vunpack.c.l.b16 %v290
    %v374 = vunpack.c.h.b16 %v290
    %v375 = vunpack.c.l.b16 %v291
    %v376 = vunpack.c.h.b16 %v291
    %v377 = vunpack.c.l.b16 %v292
    %v378 = vunpack.c.h.b16 %v292
    %v379 = vunpack.c.l.b16 %v293
    %v380 = vunpack.c.h.b16 %v293
    %v381 = vunpack.c.l.b16 %v294
    %v382 = vunpack.c.h.b16 %v294
    %v383 = vunpack.c.l.b16 %v295
    %v384 = vunpack.c.h.b16 %v295
    %v385 = vunpack.c.l.b16 %v296
    %v386 = vunpack.c.h.b16 %v296
    %v387 = vunpack.c.l.b16 %v297
    %v388 = vunpack.c.h.b16 %v297
    %v389 = vunpack.c.l.b16 %v298
    %v390 = vunpack.c.h.b16 %v298
    %v391 = vunpack.c.l.b16 %v299
    %v392 = vunpack.c.h.b16 %v299
    %v393 = vunpack.c.l.b16 %v300
    %v394 = vunpack.c.h.b16 %v300
    %v395 = vunpack.c.l.b16 %v301
    %v396 = vunpack.c.h.b16 %v301
    %v397 = vunpack.c.l.b16 %v302
    %v398 = vunpack.c.h.b16 %v302
    %v399 = vunpack.c.l.b16 %v303
    %v400 = vunpack.c.h.b16 %v303
    %v401 = vunpack.c.l.b16 %v304
    %v402 = vunpack.c.h.b16 %v304
    %v403 = vunpack.c.l.b16 %v305
    %v404 = vunpack.c.h.b16 %v305
    %v405 = vunpack.c.l.b16 %v306
    %v406 = vunpack.c.h.b16 %v306
    %v407 = vunpack.c.l.b16 %v307
    %v408 = vunpack.c.h.b16 %v307
    %v409 = vunpack.c.l.b16 %v308
    %v410 = vunpack.c.h.b16 %v308
    %v411 = vunpack.c.l.b16 %v309
    %v412 = vunpack.c.h.b16 %v309
    %v413 = vunpack.c.l.b16 %v310
    %v414 = vunpack.c.h.b16 %v310
    %v415 = vunpack.c.l.b16 %v311
    %v416 = vunpack.c.h.b16 %v311
    %v417 = vunpack.c.l.b16 %v312
    %v418 = vunpack.c.h.b16 %v312
    %v419 = vpack.c.b16 %v359, %v355
    %v420 = vpack.c.b16 %v360, %v356
    %v421 = vpack.c.b16 %v361, %v357
    %v422 = vpack.c.b16 %v362, %v358
    %v423 = vpack.c.b16 %v367, %v363
    %v424 = vpack.c.b16 %v368, %v364
    %v425 = vpack.c.b16 %v369, %v365
    %v426 = vpack.c.b16 %v370, %v366
    %v427 = vpack.c.b16 %v375, %v371
    %v428 = vpack.c.b16 %v376, %v372
    %v429 = vpack.c.b16 %v377, %v373
    %v430 = vpack.c.b16 %v378, %v374
    %v431 = vpack.c.b16 %v383, %v379
    %v432 = vpack.c.b16 %v384, %v380
    %v433 = vpack.c.b16 %v385, %v381
    %v434 = vpack.c.b16 %v386, %v382
    %v435 = vpack.c.b16 %v391, %v387
    %v436 = vpack.c.b16 %v392, %v388
    %v437 = vpack.c.b16 %v393, %v389
    %v438 = vpack.c.b16 %v394, %v390
    %v439 = vpack.c.b16 %v399, %v395
    %v440 = vpack.c.b16 %v400, %v396
    %v441 = vpack.c.b16 %v401, %v397
    %v442 = vpack.c.b16 %v402, %v398
    %v443 = vpack.c.b16 %v407, %v403
    %v444 = vpack.c.b16 %v408, %v404
    %v445 = vpack.c.b16 %v409, %v405
    %v446 = vpack.c.b16 %v410, %v406
    %v447 = vpack.c.b16 %v415, %v411
    %v448 = vpack.c.b16 %v416, %v412
    %v449 = vpack.c.b16 %v417, %v413
    %v450 = vpack.c.b16 %v418, %v414
    %483 = vmatpush.bf16.msra.mxu0 %v447
    %484 = vmatpush.bf16.msra.mxu0 %v443
    %485 = vmatpush.bf16.msra.mxu0 %v439
    %486 = vmatpush.bf16.msra.mxu0 %v435
    %487 = vmatpush.bf16.msra.mxu0 %v431
    %488 = vmatpush.bf16.msra.mxu0 %v427
    %489 = vmatpush.bf16.msra.mxu0 %v423
    %490 = vmatpush.bf16.msra.mxu0 %v419
    %491 = vmatmul.bf16.gmra.mxu0 %v280
    %v492 = vpop.f32.mrf.mxu0
    %v493 = vadd.f32 %v315, %v492
    %v494 = vpop.f32.mrf.mxu0
    %495 = vdwg.mxu0
    %496 = vmatpush.bf16.msra.mxu0 %v448
    %497 = vmatpush.bf16.msra.mxu0 %v444
    %498 = vmatpush.bf16.msra.mxu0 %v440
    %499 = vmatpush.bf16.msra.mxu0 %v436
    %500 = vmatpush.bf16.msra.mxu0 %v432
    %501 = vmatpush.bf16.msra.mxu0 %v428
    %502 = vmatpush.bf16.msra.mxu0 %v424
    %503 = vmatpush.bf16.msra.mxu0 %v420
    %504 = vmatmul.bf16.gmra.mxu0 %v280
    %v505 = vpop.f32.mrf.mxu0
    %v506 = vadd.f32 %v316, %v505
    %v507 = vpop.f32.mrf.mxu0
    %508 = vdwg.mxu0
    %509 = vmatpush.bf16.msra.mxu0 %v449
    %510 = vmatpush.bf16.msra.mxu0 %v445
    %511 = vmatpush.bf16.msra.mxu0 %v441
    %512 = vmatpush.bf16.msra.mxu0 %v437
    %513 = vmatpush.bf16.msra.mxu0 %v433
    %514 = vmatpush.bf16.msra.mxu0 %v429
    %515 = vmatpush.bf16.msra.mxu0 %v425
    %516 = vmatpush.bf16.msra.mxu0 %v421
    %517 = vmatmul.bf16.gmra.mxu0 %v280
    %v518 = vpop.f32.mrf.mxu0
    %v519 = vadd.f32 %v317, %v518
    %v520 = vpop.f32.mrf.mxu0
    %521 = vdwg.mxu0
    %522 = vmatpush.bf16.msra.mxu0 %v450
    %523 = vmatpush.bf16.msra.mxu0 %v446
    %524 = vmatpush.bf16.msra.mxu0 %v442
    %525 = vmatpush.bf16.msra.mxu0 %v438
    %526 = vmatpush.bf16.msra.mxu0 %v434
    %527 = vmatpush.bf16.msra.mxu0 %v430
    %528 = vmatpush.bf16.msra.mxu0 %v426
    %529 = vmatpush.bf16.msra.mxu0 %v422
    %530 = vmatmul.bf16.gmra.mxu0 %v280
    %v531 = vpop.f32.mrf.mxu0
    %v532 = vadd.f32 %v318, %v531
    %v533 = vpop.f32.mrf.mxu0
    %534 = vdwg.mxu0
    %v535 = vmax.f32 %v493, 0.0
    %v536 = vmax.f32 %v506, 0.0
    %v537 = vmax.f32 %v519, 0.0
    %v538 = vmax.f32 %v532, 0.0
    %v539 = vpack.c.bf16 %v535, %v535
    %v540 = vpack.c.bf16 %v536, %v536
    %v541 = vpack.c.bf16 %v537, %v537
    %v542 = vpack.c.bf16 %v538, %v538
    %v543 = vld [vmem:[#allocation7] sm:$0xff]
    %v544 = vld [vmem:[#allocation7 + $0x8] sm:$0xff]
    %v545 = vld [vmem:[#allocation7 + $0x10] sm:$0xff]
    %v546 = vld [vmem:[#allocation7 + $0x18] sm:$0xff]
    %v547 = vld [vmem:[#allocation7 + $0x20] sm:$0xff]
    %v548 = vld [vmem:[#allocation7 + $0x28] sm:$0xff]
    %v549 = vld [vmem:[#allocation7 + $0x30] sm:$0xff]
    %v550 = vld [vmem:[#allocation7 + $0x38] sm:$0xff]
    %v551 = vld [vmem:[#allocation7 + $0x40] sm:$0xff]
    %v552 = vld [vmem:[#allocation7 + $0x48] sm:$0xff]
    %v553 = vld [vmem:[#allocation7 + $0x50] sm:$0xff]
    %v554 = vld [vmem:[#allocation7 + $0x58] sm:$0xff]
    %v555 = vld [vmem:[#allocation7 + $0x60] sm:$0xff]
    %v556 = vld [vmem:[#allocation7 + $0x68] sm:$0xff]
    %v557 = vld [vmem:[#allocation7 + $0x70] sm:$0xff]
    %v558 = vld [vmem:[#allocation7 + $0x78] sm:$0xff]
    %v559 = vld [vmem:[#allocation7 + $0x80] sm:$0xff]
    %v560 = vld [vmem:[#allocation7 + $0x88] sm:$0xff]
    %v561 = vld [vmem:[#allocation7 + $0x90] sm:$0xff]
    %v562 = vld [vmem:[#allocation7 + $0x98] sm:$0xff]
    %v563 = vld [vmem:[#allocation7 + $0xa0] sm:$0xff]
    %v564 = vld [vmem:[#allocation7 + $0xa8] sm:$0xff]
    %v565 = vld [vmem:[#allocation7 + $0xb0] sm:$0xff]
    %v566 = vld [vmem:[#allocation7 + $0xb8] sm:$0xff]
    %v567 = vld [vmem:[#allocation7 + $0xc0] sm:$0xff]
    %v568 = vld [vmem:[#allocation7 + $0xc8] sm:$0xff]
    %v569 = vld [vmem:[#allocation7 + $0xd0] sm:$0xff]
    %v570 = vld [vmem:[#allocation7 + $0xd8] sm:$0xff]
    %v571 = vld [vmem:[#allocation7 + $0xe0] sm:$0xff]
    %v572 = vld [vmem:[#allocation7 + $0xe8] sm:$0xff]
    %v573 = vld [vmem:[#allocation7 + $0xf0] sm:$0xff]
    %v574 = vld [vmem:[#allocation7 + $0xf8] sm:$0xff]
    %v575 = vld [vmem:[#allocation7 + $0x100] sm:$0xff]
    %v576 = vld [vmem:[#allocation7 + $0x108] sm:$0xff]
    %v577 = vld [vmem:[#allocation7 + $0x110] sm:$0xff]
    %v578 = vld [vmem:[#allocation7 + $0x118] sm:$0xff]
    %v579 = vld [vmem:[#allocation7 + $0x120] sm:$0xff]
    %v580 = vld [vmem:[#allocation7 + $0x128] sm:$0xff]
    %v581 = vld [vmem:[#allocation7 + $0x130] sm:$0xff]
    %v582 = vld [vmem:[#allocation7 + $0x138] sm:$0xff]
    %v583 = vld [vmem:[#allocation7 + $0x140] sm:$0xff]
    %v584 = vld [vmem:[#allocation7 + $0x148] sm:$0xff]
    %v585 = vld [vmem:[#allocation7 + $0x150] sm:$0xff]
    %v586 = vld [vmem:[#allocation7 + $0x158] sm:$0xff]
    %v587 = vld [vmem:[#allocation7 + $0x160] sm:$0xff]
    %v588 = vld [vmem:[#allocation7 + $0x168] sm:$0xff]
    %v589 = vld [vmem:[#allocation7 + $0x170] sm:$0xff]
    %v590 = vld [vmem:[#allocation7 + $0x178] sm:$0xff]
    %v591 = vld [vmem:[#allocation7 + $0x180] sm:$0xff]
    %v592 = vld [vmem:[#allocation7 + $0x188] sm:$0xff]
    %v593 = vld [vmem:[#allocation7 + $0x190] sm:$0xff]
    %v594 = vld [vmem:[#allocation7 + $0x198] sm:$0xff]
    %v595 = vld [vmem:[#allocation7 + $0x1a0] sm:$0xff]
    %v596 = vld [vmem:[#allocation7 + $0x1a8] sm:$0xff]
    %v597 = vld [vmem:[#allocation7 + $0x1b0] sm:$0xff]
    %v598 = vld [vmem:[#allocation7 + $0x1b8] sm:$0xff]
    %v599 = vld [vmem:[#allocation7 + $0x1c0] sm:$0xff]
    %v600 = vld [vmem:[#allocation7 + $0x1c8] sm:$0xff]
    %v601 = vld [vmem:[#allocation7 + $0x1d0] sm:$0xff]
    %v602 = vld [vmem:[#allocation7 + $0x1d8] sm:$0xff]
    %v603 = vld [vmem:[#allocation7 + $0x1e0] sm:$0xff]
    %v604 = vld [vmem:[#allocation7 + $0x1e8] sm:$0xff]
    %v605 = vld [vmem:[#allocation7 + $0x1f0] sm:$0xff]
    %v606 = vld [vmem:[#allocation7 + $0x1f8] sm:$0xff]
    %v607 = vld [vmem:[#allocation7 + $0x200] sm:$0xff]
    %v608 = vld [vmem:[#allocation7 + $0x208] sm:$0xff]
    %v609 = vld [vmem:[#allocation7 + $0x210] sm:$0xff]
    %v610 = vld [vmem:[#allocation7 + $0x218] sm:$0xff]
    %v611 = vld [vmem:[#allocation7 + $0x220] sm:$0xff]
    %v612 = vld [vmem:[#allocation7 + $0x228] sm:$0xff]
    %v613 = vld [vmem:[#allocation7 + $0x230] sm:$0xff]
    %v614 = vld [vmem:[#allocation7 + $0x238] sm:$0xff]
    %v615 = vld [vmem:[#allocation7 + $0x240] sm:$0xff]
    %v616 = vld [vmem:[#allocation7 + $0x248] sm:$0xff]
    %v617 = vld [vmem:[#allocation7 + $0x250] sm:$0xff]
    %v618 = vld [vmem:[#allocation7 + $0x258] sm:$0xff]
    %v619 = vld [vmem:[#allocation7 + $0x260] sm:$0xff]
    %v620 = vld [vmem:[#allocation7 + $0x268] sm:$0xff]
    %v621 = vld [vmem:[#allocation7 + $0x270] sm:$0xff]
    %v622 = vld [vmem:[#allocation7 + $0x278] sm:$0xff]
    %v623 = vld [vmem:[#allocation7 + $0x280] sm:$0xff]
    %v624 = vld [vmem:[#allocation7 + $0x288] sm:$0xff]
    %v625 = vld [vmem:[#allocation7 + $0x290] sm:$0xff]
    %v626 = vld [vmem:[#allocation7 + $0x298] sm:$0xff]
    %v627 = vld [vmem:[#allocation7 + $0x2a0] sm:$0xff]
    %v628 = vld [vmem:[#allocation7 + $0x2a8] sm:$0xff]
    %v629 = vld [vmem:[#allocation7 + $0x2b0] sm:$0xff]
    %v630 = vld [vmem:[#allocation7 + $0x2b8] sm:$0xff]
    %v631 = vld [vmem:[#allocation7 + $0x2c0] sm:$0xff]
    %v632 = vld [vmem:[#allocation7 + $0x2c8] sm:$0xff]
    %v633 = vld [vmem:[#allocation7 + $0x2d0] sm:$0xff]
    %v634 = vld [vmem:[#allocation7 + $0x2d8] sm:$0xff]
    %v635 = vld [vmem:[#allocation7 + $0x2e0] sm:$0xff]
    %v636 = vld [vmem:[#allocation7 + $0x2e8] sm:$0xff]
    %v637 = vld [vmem:[#allocation7 + $0x2f0] sm:$0xff]
    %v638 = vld [vmem:[#allocation7 + $0x2f8] sm:$0xff]
    %v639 = vld [vmem:[#allocation7 + $0x300] sm:$0xff]
    %v640 = vld [vmem:[#allocation7 + $0x308] sm:$0xff]
    %v641 = vld [vmem:[#allocation7 + $0x310] sm:$0xff]
    %v642 = vld [vmem:[#allocation7 + $0x318] sm:$0xff]
    %v643 = vld [vmem:[#allocation7 + $0x320] sm:$0xff]
    %v644 = vld [vmem:[#allocation7 + $0x328] sm:$0xff]
    %v645 = vld [vmem:[#allocation7 + $0x330] sm:$0xff]
    %v646 = vld [vmem:[#allocation7 + $0x338] sm:$0xff]
    %v647 = vld [vmem:[#allocation7 + $0x340] sm:$0xff]
    %v648 = vld [vmem:[#allocation7 + $0x348] sm:$0xff]
    %v649 = vld [vmem:[#allocation7 + $0x350] sm:$0xff]
    %v650 = vld [vmem:[#allocation7 + $0x358] sm:$0xff]
    %v651 = vld [vmem:[#allocation7 + $0x360] sm:$0xff]
    %v652 = vld [vmem:[#allocation7 + $0x368] sm:$0xff]
    %v653 = vld [vmem:[#allocation7 + $0x370] sm:$0xff]
    %v654 = vld [vmem:[#allocation7 + $0x378] sm:$0xff]
    %v655 = vld [vmem:[#allocation7 + $0x380] sm:$0xff]
    %v656 = vld [vmem:[#allocation7 + $0x388] sm:$0xff]
    %v657 = vld [vmem:[#allocation7 + $0x390] sm:$0xff]
    %v658 = vld [vmem:[#allocation7 + $0x398] sm:$0xff]
    %v659 = vld [vmem:[#allocation7 + $0x3a0] sm:$0xff]
    %v660 = vld [vmem:[#allocation7 + $0x3a8] sm:$0xff]
    %v661 = vld [vmem:[#allocation7 + $0x3b0] sm:$0xff]
    %v662 = vld [vmem:[#allocation7 + $0x3b8] sm:$0xff]
    %v663 = vld [vmem:[#allocation7 + $0x3c0] sm:$0xff]
    %v664 = vld [vmem:[#allocation7 + $0x3c8] sm:$0xff]
    %v665 = vld [vmem:[#allocation7 + $0x3d0] sm:$0xff]
    %v666 = vld [vmem:[#allocation7 + $0x3d8] sm:$0xff]
    %v667 = vld [vmem:[#allocation7 + $0x3e0] sm:$0xff]
    %v668 = vld [vmem:[#allocation7 + $0x3e8] sm:$0xff]
    %v669 = vld [vmem:[#allocation7 + $0x3f0] sm:$0xff]
    %v670 = vld [vmem:[#allocation7 + $0x3f8] sm:$0xff]
    %v671 = vld [vmem:[%s6] sm:$0xf]
    %v673 = vperm.slane %v671, 0
    %v674 = vperm.slane %v671, 1
    %v675 = vperm.slane %v671, 2
    %v676 = vperm.slane %v671, 3
    %v809 = vunpack.c.l.b16 %v543
    %v810 = vunpack.c.h.b16 %v543
    %v811 = vunpack.c.l.b16 %v544
    %v812 = vunpack.c.h.b16 %v544
    %v813 = vunpack.c.l.b16 %v545
    %v814 = vunpack.c.h.b16 %v545
    %v815 = vunpack.c.l.b16 %v546
    %v816 = vunpack.c.h.b16 %v546
    %v817 = vunpack.c.l.b16 %v547
    %v818 = vunpack.c.h.b16 %v547
    %v819 = vunpack.c.l.b16 %v548
    %v820 = vunpack.c.h.b16 %v548
    %v821 = vunpack.c.l.b16 %v549
    %v822 = vunpack.c.h.b16 %v549
    %v823 = vunpack.c.l.b16 %v550
    %v824 = vunpack.c.h.b16 %v550
    %v825 = vunpack.c.l.b16 %v551
    %v826 = vunpack.c.h.b16 %v551
    %v827 = vunpack.c.l.b16 %v552
    %v828 = vunpack.c.h.b16 %v552
    %v829 = vunpack.c.l.b16 %v553
    %v830 = vunpack.c.h.b16 %v553
    %v831 = vunpack.c.l.b16 %v554
    %v832 = vunpack.c.h.b16 %v554
    %v833 = vunpack.c.l.b16 %v555
    %v834 = vunpack.c.h.b16 %v555
    %v835 = vunpack.c.l.b16 %v556
    %v836 = vunpack.c.h.b16 %v556
    %v837 = vunpack.c.l.b16 %v557
    %v838 = vunpack.c.h.b16 %v557
    %v839 = vunpack.c.l.b16 %v558
    %v840 = vunpack.c.h.b16 %v558
    %v841 = vunpack.c.l.b16 %v559
    %v842 = vunpack.c.h.b16 %v559
    %v843 = vunpack.c.l.b16 %v560
    %v844 = vunpack.c.h.b16 %v560
    %v845 = vunpack.c.l.b16 %v561
    %v846 = vunpack.c.h.b16 %v561
    %v847 = vunpack.c.l.b16 %v562
    %v848 = vunpack.c.h.b16 %v562
    %v849 = vunpack.c.l.b16 %v563
    %v850 = vunpack.c.h.b16 %v563
    %v851 = vunpack.c.l.b16 %v564
    %v852 = vunpack.c.h.b16 %v564
    %v853 = vunpack.c.l.b16 %v565
    %v854 = vunpack.c.h.b16 %v565
    %v855 = vunpack.c.l.b16 %v566
    %v856 = vunpack.c.h.b16 %v566
    %v857 = vunpack.c.l.b16 %v567
    %v858 = vunpack.c.h.b16 %v567
    %v859 = vunpack.c.l.b16 %v568
    %v860 = vunpack.c.h.b16 %v568
    %v861 = vunpack.c.l.b16 %v569
    %v862 = vunpack.c.h.b16 %v569
    %v863 = vunpack.c.l.b16 %v570
    %v864 = vunpack.c.h.b16 %v570
    %v865 = vunpack.c.l.b16 %v571
    %v866 = vunpack.c.h.b16 %v571
    %v867 = vunpack.c.l.b16 %v572
    %v868 = vunpack.c.h.b16 %v572
    %v869 = vunpack.c.l.b16 %v573
    %v870 = vunpack.c.h.b16 %v573
    %v871 = vunpack.c.l.b16 %v574
    %v872 = vunpack.c.h.b16 %v574
    %v873 = vunpack.c.l.b16 %v575
    %v874 = vunpack.c.h.b16 %v575
    %v875 = vunpack.c.l.b16 %v576
    %v876 = vunpack.c.h.b16 %v576
    %v877 = vunpack.c.l.b16 %v577
    %v878 = vunpack.c.h.b16 %v577
    %v879 = vunpack.c.l.b16 %v578
    %v880 = vunpack.c.h.b16 %v578
    %v881 = vunpack.c.l.b16 %v579
    %v882 = vunpack.c.h.b16 %v579
    %v883 = vunpack.c.l.b16 %v580
    %v884 = vunpack.c.h.b16 %v580
    %v885 = vunpack.c.l.b16 %v581
    %v886 = vunpack.c.h.b16 %v581
    %v887 = vunpack.c.l.b16 %v582
    %v888 = vunpack.c.h.b16 %v582
    %v889 = vunpack.c.l.b16 %v583
    %v890 = vunpack.c.h.b16 %v583
    %v891 = vunpack.c.l.b16 %v584
    %v892 = vunpack.c.h.b16 %v584
    %v893 = vunpack.c.l.b16 %v585
    %v894 = vunpack.c.h.b16 %v585
    %v895 = vunpack.c.l.b16 %v586
    %v896 = vunpack.c.h.b16 %v586
    %v897 = vunpack.c.l.b16 %v587
    %v898 = vunpack.c.h.b16 %v587
    %v899 = vunpack.c.l.b16 %v588
    %v900 = vunpack.c.h.b16 %v588
    %v901 = vunpack.c.l.b16 %v589
    %v902 = vunpack.c.h.b16 %v589
    %v903 = vunpack.c.l.b16 %v590
    %v904 = vunpack.c.h.b16 %v590
    %v905 = vunpack.c.l.b16 %v591
    %v906 = vunpack.c.h.b16 %v591
    %v907 = vunpack.c.l.b16 %v592
    %v908 = vunpack.c.h.b16 %v592
    %v909 = vunpack.c.l.b16 %v593
    %v910 = vunpack.c.h.b16 %v593
    %v911 = vunpack.c.l.b16 %v594
    %v912 = vunpack.c.h.b16 %v594
    %v913 = vunpack.c.l.b16 %v595
    %v914 = vunpack.c.h.b16 %v595
    %v915 = vunpack.c.l.b16 %v596
    %v916 = vunpack.c.h.b16 %v596
    %v917 = vunpack.c.l.b16 %v597
    %v918 = vunpack.c.h.b16 %v597
    %v919 = vunpack.c.l.b16 %v598
    %v920 = vunpack.c.h.b16 %v598
    %v921 = vunpack.c.l.b16 %v599
    %v922 = vunpack.c.h.b16 %v599
    %v923 = vunpack.c.l.b16 %v600
    %v924 = vunpack.c.h.b16 %v600
    %v925 = vunpack.c.l.b16 %v601
    %v926 = vunpack.c.h.b16 %v601
    %v927 = vunpack.c.l.b16 %v602
    %v928 = vunpack.c.h.b16 %v602
    %v929 = vunpack.c.l.b16 %v603
    %v930 = vunpack.c.h.b16 %v603
    %v931 = vunpack.c.l.b16 %v604
    %v932 = vunpack.c.h.b16 %v604
    %v933 = vunpack.c.l.b16 %v605
    %v934 = vunpack.c.h.b16 %v605
    %v935 = vunpack.c.l.b16 %v606
    %v936 = vunpack.c.h.b16 %v606
    %v937 = vunpack.c.l.b16 %v607
    %v938 = vunpack.c.h.b16 %v607
    %v939 = vunpack.c.l.b16 %v608
    %v940 = vunpack.c.h.b16 %v608
    %v941 = vunpack.c.l.b16 %v609
    %v942 = vunpack.c.h.b16 %v609
    %v943 = vunpack.c.l.b16 %v610
    %v944 = vunpack.c.h.b16 %v610
    %v945 = vunpack.c.l.b16 %v611
    %v946 = vunpack.c.h.b16 %v611
    %v947 = vunpack.c.l.b16 %v612
    %v948 = vunpack.c.h.b16 %v612
    %v949 = vunpack.c.l.b16 %v613
    %v950 = vunpack.c.h.b16 %v613
    %v951 = vunpack.c.l.b16 %v614
    %v952 = vunpack.c.h.b16 %v614
    %v953 = vunpack.c.l.b16 %v615
    %v954 = vunpack.c.h.b16 %v615
    %v955 = vunpack.c.l.b16 %v616
    %v956 = vunpack.c.h.b16 %v616
    %v957 = vunpack.c.l.b16 %v617
    %v958 = vunpack.c.h.b16 %v617
    %v959 = vunpack.c.l.b16 %v618
    %v960 = vunpack.c.h.b16 %v618
    %v961 = vunpack.c.l.b16 %v619
    %v962 = vunpack.c.h.b16 %v619
    %v963 = vunpack.c.l.b16 %v620
    %v964 = vunpack.c.h.b16 %v620
    %v965 = vunpack.c.l.b16 %v621
    %v966 = vunpack.c.h.b16 %v621
    %v967 = vunpack.c.l.b16 %v622
    %v968 = vunpack.c.h.b16 %v622
    %v969 = vunpack.c.l.b16 %v623
    %v970 = vunpack.c.h.b16 %v623
    %v971 = vunpack.c.l.b16 %v624
    %v972 = vunpack.c.h.b16 %v624
    %v973 = vunpack.c.l.b16 %v625
    %v974 = vunpack.c.h.b16 %v625
    %v975 = vunpack.c.l.b16 %v626
    %v976 = vunpack.c.h.b16 %v626
    %v977 = vunpack.c.l.b16 %v627
    %v978 = vunpack.c.h.b16 %v627
    %v979 = vunpack.c.l.b16 %v628
    %v980 = vunpack.c.h.b16 %v628
    %v981 = vunpack.c.l.b16 %v629
    %v982 = vunpack.c.h.b16 %v629
    %v983 = vunpack.c.l.b16 %v630
    %v984 = vunpack.c.h.b16 %v630
    %v985 = vunpack.c.l.b16 %v631
    %v986 = vunpack.c.h.b16 %v631
    %v987 = vunpack.c.l.b16 %v632
    %v988 = vunpack.c.h.b16 %v632
    %v989 = vunpack.c.l.b16 %v633
    %v990 = vunpack.c.h.b16 %v633
    %v991 = vunpack.c.l.b16 %v634
    %v992 = vunpack.c.h.b16 %v634
    %v993 = vunpack.c.l.b16 %v635
    %v994 = vunpack.c.h.b16 %v635
    %v995 = vunpack.c.l.b16 %v636
    %v996 = vunpack.c.h.b16 %v636
    %v997 = vunpack.c.l.b16 %v637
    %v998 = vunpack.c.h.b16 %v637
    %v999 = vunpack.c.l.b16 %v638
    %v1000 = vunpack.c.h.b16 %v638
    %v1001 = vunpack.c.l.b16 %v639
    %v1002 = vunpack.c.h.b16 %v639
    %v1003 = vunpack.c.l.b16 %v640
    %v1004 = vunpack.c.h.b16 %v640
    %v1005 = vunpack.c.l.b16 %v641
    %v1006 = vunpack.c.h.b16 %v641
    %v1007 = vunpack.c.l.b16 %v642
    %v1008 = vunpack.c.h.b16 %v642
    %v1009 = vunpack.c.l.b16 %v643
    %v1010 = vunpack.c.h.b16 %v643
    %v1011 = vunpack.c.l.b16 %v644
    %v1012 = vunpack.c.h.b16 %v644
    %v1013 = vunpack.c.l.b16 %v645
    %v1014 = vunpack.c.h.b16 %v645
    %v1015 = vunpack.c.l.b16 %v646
    %v1016 = vunpack.c.h.b16 %v646
    %v1017 = vunpack.c.l.b16 %v647
    %v1018 = vunpack.c.h.b16 %v647
    %v1019 = vunpack.c.l.b16 %v648
    %v1020 = vunpack.c.h.b16 %v648
    %v1021 = vunpack.c.l.b16 %v649
    %v1022 = vunpack.c.h.b16 %v649
    %v1023 = vunpack.c.l.b16 %v650
    %v1024 = vunpack.c.h.b16 %v650
    %v1025 = vunpack.c.l.b16 %v651
    %v1026 = vunpack.c.h.b16 %v651
    %v1027 = vunpack.c.l.b16 %v652
    %v1028 = vunpack.c.h.b16 %v652
    %v1029 = vunpack.c.l.b16 %v653
    %v1030 = vunpack.c.h.b16 %v653
    %v1031 = vunpack.c.l.b16 %v654
    %v1032 = vunpack.c.h.b16 %v654
    %v1033 = vunpack.c.l.b16 %v655
    %v1034 = vunpack.c.h.b16 %v655
    %v1035 = vunpack.c.l.b16 %v656
    %v1036 = vunpack.c.h.b16 %v656
    %v1037 = vunpack.c.l.b16 %v657
    %v1038 = vunpack.c.h.b16 %v657
    %v1039 = vunpack.c.l.b16 %v658
    %v1040 = vunpack.c.h.b16 %v658
    %v1041 = vunpack.c.l.b16 %v659
    %v1042 = vunpack.c.h.b16 %v659
    %v1043 = vunpack.c.l.b16 %v660
    %v1044 = vunpack.c.h.b16 %v660
    %v1045 = vunpack.c.l.b16 %v661
    %v1046 = vunpack.c.h.b16 %v661
    %v1047 = vunpack.c.l.b16 %v662
    %v1048 = vunpack.c.h.b16 %v662
    %v1049 = vunpack.c.l.b16 %v663
    %v1050 = vunpack.c.h.b16 %v663
    %v1051 = vunpack.c.l.b16 %v664
    %v1052 = vunpack.c.h.b16 %v664
    %v1053 = vunpack.c.l.b16 %v665
    %v1054 = vunpack.c.h.b16 %v665
    %v1055 = vunpack.c.l.b16 %v666
    %v1056 = vunpack.c.h.b16 %v666
    %v1057 = vunpack.c.l.b16 %v667
    %v1058 = vunpack.c.h.b16 %v667
    %v1059 = vunpack.c.l.b16 %v668
    %v1060 = vunpack.c.h.b16 %v668
    %v1061 = vunpack.c.l.b16 %v669
    %v1062 = vunpack.c.h.b16 %v669
    %v1063 = vunpack.c.l.b16 %v670
    %v1064 = vunpack.c.h.b16 %v670
    %v1065 = vpack.c.b16 %v813, %v809
    %v1066 = vpack.c.b16 %v814, %v810
    %v1067 = vpack.c.b16 %v815, %v811
    %v1068 = vpack.c.b16 %v816, %v812
    %v1069 = vpack.c.b16 %v821, %v817
    %v1070 = vpack.c.b16 %v822, %v818
    %v1071 = vpack.c.b16 %v823, %v819
    %v1072 = vpack.c.b16 %v824, %v820
    %v1073 = vpack.c.b16 %v829, %v825
    %v1074 = vpack.c.b16 %v830, %v826
    %v1075 = vpack.c.b16 %v831, %v827
    %v1076 = vpack.c.b16 %v832, %v828
    %v1077 = vpack.c.b16 %v837, %v833
    %v1078 = vpack.c.b16 %v838, %v834
    %v1079 = vpack.c.b16 %v839, %v835
    %v1080 = vpack.c.b16 %v840, %v836
    %v1081 = vpack.c.b16 %v845, %v841
    %v1082 = vpack.c.b16 %v846, %v842
    %v1083 = vpack.c.b16 %v847, %v843
    %v1084 = vpack.c.b16 %v848, %v844
    %v1085 = vpack.c.b16 %v853, %v849
    %v1086 = vpack.c.b16 %v854, %v850
    %v1087 = vpack.c.b16 %v855, %v851
    %v1088 = vpack.c.b16 %v856, %v852
    %v1089 = vpack.c.b16 %v861, %v857
    %v1090 = vpack.c.b16 %v862, %v858
    %v1091 = vpack.c.b16 %v863, %v859
    %v1092 = vpack.c.b16 %v864, %v860
    %v1093 = vpack.c.b16 %v869, %v865
    %v1094 = vpack.c.b16 %v870, %v866
    %v1095 = vpack.c.b16 %v871, %v867
    %v1096 = vpack.c.b16 %v872, %v868
    %v1097 = vpack.c.b16 %v877, %v873
    %v1098 = vpack.c.b16 %v878, %v874
    %v1099 = vpack.c.b16 %v879, %v875
    %v1100 = vpack.c.b16 %v880, %v876
    %v1101 = vpack.c.b16 %v885, %v881
    %v1102 = vpack.c.b16 %v886, %v882
    %v1103 = vpack.c.b16 %v887, %v883
    %v1104 = vpack.c.b16 %v888, %v884
    %v1105 = vpack.c.b16 %v893, %v889
    %v1106 = vpack.c.b16 %v894, %v890
    %v1107 = vpack.c.b16 %v895, %v891
    %v1108 = vpack.c.b16 %v896, %v892
    %v1109 = vpack.c.b16 %v901, %v897
    %v1110 = vpack.c.b16 %v902, %v898
    %v1111 = vpack.c.b16 %v903, %v899
    %v1112 = vpack.c.b16 %v904, %v900
    %v1113 = vpack.c.b16 %v909, %v905
    %v1114 = vpack.c.b16 %v910, %v906
    %v1115 = vpack.c.b16 %v911, %v907
    %v1116 = vpack.c.b16 %v912, %v908
    %v1117 = vpack.c.b16 %v917, %v913
    %v1118 = vpack.c.b16 %v918, %v914
    %v1119 = vpack.c.b16 %v919, %v915
    %v1120 = vpack.c.b16 %v920, %v916
    %v1121 = vpack.c.b16 %v925, %v921
    %v1122 = vpack.c.b16 %v926, %v922
    %v1123 = vpack.c.b16 %v927, %v923
    %v1124 = vpack.c.b16 %v928, %v924
    %v1125 = vpack.c.b16 %v933, %v929
    %v1126 = vpack.c.b16 %v934, %v930
    %v1127 = vpack.c.b16 %v935, %v931
    %v1128 = vpack.c.b16 %v936, %v932
    %v1129 = vpack.c.b16 %v941, %v937
    %v1130 = vpack.c.b16 %v942, %v938
    %v1131 = vpack.c.b16 %v943, %v939
    %v1132 = vpack.c.b16 %v944, %v940
    %v1133 = vpack.c.b16 %v949, %v945
    %v1134 = vpack.c.b16 %v950, %v946
    %v1135 = vpack.c.b16 %v951, %v947
    %v1136 = vpack.c.b16 %v952, %v948
    %v1137 = vpack.c.b16 %v957, %v953
    %v1138 = vpack.c.b16 %v958, %v954
    %v1139 = vpack.c.b16 %v959, %v955
    %v1140 = vpack.c.b16 %v960, %v956
    %v1141 = vpack.c.b16 %v965, %v961
    %v1142 = vpack.c.b16 %v966, %v962
    %v1143 = vpack.c.b16 %v967, %v963
    %v1144 = vpack.c.b16 %v968, %v964
    %v1145 = vpack.c.b16 %v973, %v969
    %v1146 = vpack.c.b16 %v974, %v970
    %v1147 = vpack.c.b16 %v975, %v971
    %v1148 = vpack.c.b16 %v976, %v972
    %v1149 = vpack.c.b16 %v981, %v977
    %v1150 = vpack.c.b16 %v982, %v978
    %v1151 = vpack.c.b16 %v983, %v979
    %v1152 = vpack.c.b16 %v984, %v980
    %v1153 = vpack.c.b16 %v989, %v985
    %v1154 = vpack.c.b16 %v990, %v986
    %v1155 = vpack.c.b16 %v991, %v987
    %v1156 = vpack.c.b16 %v992, %v988
    %v1157 = vpack.c.b16 %v997, %v993
    %v1158 = vpack.c.b16 %v998, %v994
    %v1159 = vpack.c.b16 %v999, %v995
    %v1160 = vpack.c.b16 %v1000, %v996
    %v1161 = vpack.c.b16 %v1005, %v1001
    %v1162 = vpack.c.b16 %v1006, %v1002
    %v1163 = vpack.c.b16 %v1007, %v1003
    %v1164 = vpack.c.b16 %v1008, %v1004
    %v1165 = vpack.c.b16 %v1013, %v1009
    %v1166 = vpack.c.b16 %v1014, %v1010
    %v1167 = vpack.c.b16 %v1015, %v1011
    %v1168 = vpack.c.b16 %v1016, %v1012
    %v1169 = vpack.c.b16 %v1021, %v1017
    %v1170 = vpack.c.b16 %v1022, %v1018
    %v1171 = vpack.c.b16 %v1023, %v1019
    %v1172 = vpack.c.b16 %v1024, %v1020
    %v1173 = vpack.c.b16 %v1029, %v1025
    %v1174 = vpack.c.b16 %v1030, %v1026
    %v1175 = vpack.c.b16 %v1031, %v1027
    %v1176 = vpack.c.b16 %v1032, %v1028
    %v1177 = vpack.c.b16 %v1037, %v1033
    %v1178 = vpack.c.b16 %v1038, %v1034
    %v1179 = vpack.c.b16 %v1039, %v1035
    %v1180 = vpack.c.b16 %v1040, %v1036
    %v1181 = vpack.c.b16 %v1045, %v1041
    %v1182 = vpack.c.b16 %v1046, %v1042
    %v1183 = vpack.c.b16 %v1047, %v1043
    %v1184 = vpack.c.b16 %v1048, %v1044
    %v1185 = vpack.c.b16 %v1053, %v1049
    %v1186 = vpack.c.b16 %v1054, %v1050
    %v1187 = vpack.c.b16 %v1055, %v1051
    %v1188 = vpack.c.b16 %v1056, %v1052
    %v1189 = vpack.c.b16 %v1061, %v1057
    %v1190 = vpack.c.b16 %v1062, %v1058
    %v1191 = vpack.c.b16 %v1063, %v1059
    %v1192 = vpack.c.b16 %v1064, %v1060
    %1321 = vmatpush.bf16.msra.mxu0 %v1093
    %1322 = vmatpush.bf16.msra.mxu0 %v1089
    %1323 = vmatpush.bf16.msra.mxu0 %v1085
    %1324 = vmatpush.bf16.msra.mxu0 %v1081
    %1325 = vmatpush.bf16.msra.mxu0 %v1077
    %1326 = vmatpush.bf16.msra.mxu0 %v1073
    %1327 = vmatpush.bf16.msra.mxu0 %v1069
    %1328 = vmatpush.bf16.msra.mxu0 %v1065
    %1329 = vmatmul.bf16.gmra.mxu0 %v539
    %v1330 = vpop.f32.mrf.mxu0
    %v1331 = vadd.f32 %v673, %v1330
    %v1332 = vpop.f32.mrf.mxu0
    %1333 = vdwg.mxu0
    %1334 = vmatpush.bf16.msra.mxu0 %v1125
    %1335 = vmatpush.bf16.msra.mxu0 %v1121
    %1336 = vmatpush.bf16.msra.mxu0 %v1117
    %1337 = vmatpush.bf16.msra.mxu0 %v1113
    %1338 = vmatpush.bf16.msra.mxu0 %v1109
    %1339 = vmatpush.bf16.msra.mxu0 %v1105
    %1340 = vmatpush.bf16.msra.mxu0 %v1101
    %1341 = vmatpush.bf16.msra.mxu0 %v1097
    %1342 = vmatmul.bf16.gmra.mxu0 %v540
    %v1343 = vpop.f32.mrf.mxu0
    %v1344 = vadd.f32 %v1331, %v1343
    %v1345 = vpop.f32.mrf.mxu0
    %1346 = vdwg.mxu0
    %1347 = vmatpush.bf16.msra.mxu0 %v1157
    %1348 = vmatpush.bf16.msra.mxu0 %v1153
    %1349 = vmatpush.bf16.msra.mxu0 %v1149
    %1350 = vmatpush.bf16.msra.mxu0 %v1145
    %1351 = vmatpush.bf16.msra.mxu0 %v1141
    %1352 = vmatpush.bf16.msra.mxu0 %v1137
    %1353 = vmatpush.bf16.msra.mxu0 %v1133
    %1354 = vmatpush.bf16.msra.mxu0 %v1129
    %1355 = vmatmul.bf16.gmra.mxu0 %v541
    %v1356 = vpop.f32.mrf.mxu0
    %v1357 = vadd.f32 %v1344, %v1356
    %v1358 = vpop.f32.mrf.mxu0
    %1359 = vdwg.mxu0
    %1360 = vmatpush.bf16.msra.mxu0 %v1189
    %1361 = vmatpush.bf16.msra.mxu0 %v1185
    %1362 = vmatpush.bf16.msra.mxu0 %v1181
    %1363 = vmatpush.bf16.msra.mxu0 %v1177
    %1364 = vmatpush.bf16.msra.mxu0 %v1173
    %1365 = vmatpush.bf16.msra.mxu0 %v1169
    %1366 = vmatpush.bf16.msra.mxu0 %v1165
    %1367 = vmatpush.bf16.msra.mxu0 %v1161
    %1368 = vmatmul.bf16.gmra.mxu0 %v542
    %v1369 = vpop.f32.mrf.mxu0
    %v1370 = vadd.f32 %v1357, %v1369
    %v1371 = vpop.f32.mrf.mxu0
    %1372 = vdwg.mxu0
    %1373 = vmatpush.bf16.msra.mxu0 %v1094
    %1374 = vmatpush.bf16.msra.mxu0 %v1090
    %1375 = vmatpush.bf16.msra.mxu0 %v1086
    %1376 = vmatpush.bf16.msra.mxu0 %v1082
    %1377 = vmatpush.bf16.msra.mxu0 %v1078
    %1378 = vmatpush.bf16.msra.mxu0 %v1074
    %1379 = vmatpush.bf16.msra.mxu0 %v1070
    %1380 = vmatpush.bf16.msra.mxu0 %v1066
    %1381 = vmatmul.bf16.gmra.mxu0 %v539
    %v1382 = vpop.f32.mrf.mxu0
    %v1383 = vadd.f32 %v674, %v1382
    %v1384 = vpop.f32.mrf.mxu0
    %1385 = vdwg.mxu0
    %1386 = vmatpush.bf16.msra.mxu0 %v1126
    %1387 = vmatpush.bf16.msra.mxu0 %v1122
    %1388 = vmatpush.bf16.msra.mxu0 %v1118
    %1389 = vmatpush.bf16.msra.mxu0 %v1114
    %1390 = vmatpush.bf16.msra.mxu0 %v1110
    %1391 = vmatpush.bf16.msra.mxu0 %v1106
    %1392 = vmatpush.bf16.msra.mxu0 %v1102
    %1393 = vmatpush.bf16.msra.mxu0 %v1098
    %1394 = vmatmul.bf16.gmra.mxu0 %v540
    %v1395 = vpop.f32.mrf.mxu0
    %v1396 = vadd.f32 %v1383, %v1395
    %v1397 = vpop.f32.mrf.mxu0
    %1398 = vdwg.mxu0
    %1399 = vmatpush.bf16.msra.mxu0 %v1158
    %1400 = vmatpush.bf16.msra.mxu0 %v1154
    %1401 = vmatpush.bf16.msra.mxu0 %v1150
    %1402 = vmatpush.bf16.msra.mxu0 %v1146
    %1403 = vmatpush.bf16.msra.mxu0 %v1142
    %1404 = vmatpush.bf16.msra.mxu0 %v1138
    %1405 = vmatpush.bf16.msra.mxu0 %v1134
    %1406 = vmatpush.bf16.msra.mxu0 %v1130
    %1407 = vmatmul.bf16.gmra.mxu0 %v541
    %v1408 = vpop.f32.mrf.mxu0
    %v1409 = vadd.f32 %v1396, %v1408
    %v1410 = vpop.f32.mrf.mxu0
    %1411 = vdwg.mxu0
    %1412 = vmatpush.bf16.msra.mxu0 %v1190
    %1413 = vmatpush.bf16.msra.mxu0 %v1186
    %1414 = vmatpush.bf16.msra.mxu0 %v1182
    %1415 = vmatpush.bf16.msra.mxu0 %v1178
    %1416 = vmatpush.bf16.msra.mxu0 %v1174
    %1417 = vmatpush.bf16.msra.mxu0 %v1170
    %1418 = vmatpush.bf16.msra.mxu0 %v1166
    %1419 = vmatpush.bf16.msra.mxu0 %v1162
    %1420 = vmatmul.bf16.gmra.mxu0 %v542
    %v1421 = vpop.f32.mrf.mxu0
    %v1422 = vadd.f32 %v1409, %v1421
    %v1423 = vpop.f32.mrf.mxu0
    %1424 = vdwg.mxu0
    %1425 = vmatpush.bf16.msra.mxu0 %v1095
    %1426 = vmatpush.bf16.msra.mxu0 %v1091
    %1427 = vmatpush.bf16.msra.mxu0 %v1087
    %1428 = vmatpush.bf16.msra.mxu0 %v1083
    %1429 = vmatpush.bf16.msra.mxu0 %v1079
    %1430 = vmatpush.bf16.msra.mxu0 %v1075
    %1431 = vmatpush.bf16.msra.mxu0 %v1071
    %1432 = vmatpush.bf16.msra.mxu0 %v1067
    %1433 = vmatmul.bf16.gmra.mxu0 %v539
    %v1434 = vpop.f32.mrf.mxu0
    %v1435 = vadd.f32 %v675, %v1434
    %v1436 = vpop.f32.mrf.mxu0
    %1437 = vdwg.mxu0
    %1438 = vmatpush.bf16.msra.mxu0 %v1127
    %1439 = vmatpush.bf16.msra.mxu0 %v1123
    %1440 = vmatpush.bf16.msra.mxu0 %v1119
    %1441 = vmatpush.bf16.msra.mxu0 %v1115
    %1442 = vmatpush.bf16.msra.mxu0 %v1111
    %1443 = vmatpush.bf16.msra.mxu0 %v1107
    %1444 = vmatpush.bf16.msra.mxu0 %v1103
    %1445 = vmatpush.bf16.msra.mxu0 %v1099
    %1446 = vmatmul.bf16.gmra.mxu0 %v540
    %v1447 = vpop.f32.mrf.mxu0
    %v1448 = vadd.f32 %v1435, %v1447
    %v1449 = vpop.f32.mrf.mxu0
    %1450 = vdwg.mxu0
    %1451 = vmatpush.bf16.msra.mxu0 %v1159
    %1452 = vmatpush.bf16.msra.mxu0 %v1155
    %1453 = vmatpush.bf16.msra.mxu0 %v1151
    %1454 = vmatpush.bf16.msra.mxu0 %v1147
    %1455 = vmatpush.bf16.msra.mxu0 %v1143
    %1456 = vmatpush.bf16.msra.mxu0 %v1139
    %1457 = vmatpush.bf16.msra.mxu0 %v1135
    %1458 = vmatpush.bf16.msra.mxu0 %v1131
    %1459 = vmatmul.bf16.gmra.mxu0 %v541
    %v1460 = vpop.f32.mrf.mxu0
    %v1461 = vadd.f32 %v1448, %v1460
    %v1462 = vpop.f32.mrf.mxu0
    %1463 = vdwg.mxu0
    %1464 = vmatpush.bf16.msra.mxu0 %v1191
    %1465 = vmatpush.bf16.msra.mxu0 %v1187
    %1466 = vmatpush.bf16.msra.mxu0 %v1183
    %1467 = vmatpush.bf16.msra.mxu0 %v1179
    %1468 = vmatpush.bf16.msra.mxu0 %v1175
    %1469 = vmatpush.bf16.msra.mxu0 %v1171
    %1470 = vmatpush.bf16.msra.mxu0 %v1167
    %1471 = vmatpush.bf16.msra.mxu0 %v1163
    %1472 = vmatmul.bf16.gmra.mxu0 %v542
    %v1473 = vpop.f32.mrf.mxu0
    %v1474 = vadd.f32 %v1461, %v1473
    %v1475 = vpop.f32.mrf.mxu0
    %1476 = vdwg.mxu0
    %1477 = vmatpush.bf16.msra.mxu0 %v1096
    %1478 = vmatpush.bf16.msra.mxu0 %v1092
    %1479 = vmatpush.bf16.msra.mxu0 %v1088
    %1480 = vmatpush.bf16.msra.mxu0 %v1084
    %1481 = vmatpush.bf16.msra.mxu0 %v1080
    %1482 = vmatpush.bf16.msra.mxu0 %v1076
    %1483 = vmatpush.bf16.msra.mxu0 %v1072
    %1484 = vmatpush.bf16.msra.mxu0 %v1068
    %1485 = vmatmul.bf16.gmra.mxu0 %v539
    %v1486 = vpop.f32.mrf.mxu0
    %v1487 = vadd.f32 %v676, %v1486
    %v1488 = vpop.f32.mrf.mxu0
    %1489 = vdwg.mxu0
    %1490 = vmatpush.bf16.msra.mxu0 %v1128
    %1491 = vmatpush.bf16.msra.mxu0 %v1124
    %1492 = vmatpush.bf16.msra.mxu0 %v1120
    %1493 = vmatpush.bf16.msra.mxu0 %v1116
    %1494 = vmatpush.bf16.msra.mxu0 %v1112
    %1495 = vmatpush.bf16.msra.mxu0 %v1108
    %1496 = vmatpush.bf16.msra.mxu0 %v1104
    %1497 = vmatpush.bf16.msra.mxu0 %v1100
    %1498 = vmatmul.bf16.gmra.mxu0 %v540
    %v1499 = vpop.f32.mrf.mxu0
    %v1500 = vadd.f32 %v1487, %v1499
    %v1501 = vpop.f32.mrf.mxu0
    %1502 = vdwg.mxu0
    %1503 = vmatpush.bf16.msra.mxu0 %v1160
    %1504 = vmatpush.bf16.msra.mxu0 %v1156
    %1505 = vmatpush.bf16.msra.mxu0 %v1152
    %1506 = vmatpush.bf16.msra.mxu0 %v1148
    %1507 = vmatpush.bf16.msra.mxu0 %v1144
    %1508 = vmatpush.bf16.msra.mxu0 %v1140
    %1509 = vmatpush.bf16.msra.mxu0 %v1136
    %1510 = vmatpush.bf16.msra.mxu0 %v1132
    %1511 = vmatmul.bf16.gmra.mxu0 %v541
    %v1512 = vpop.f32.mrf.mxu0
    %v1513 = vadd.f32 %v1500, %v1512
    %v1514 = vpop.f32.mrf.mxu0
    %1515 = vdwg.mxu0
    %1516 = vmatpush.bf16.msra.mxu0 %v1192
    %1517 = vmatpush.bf16.msra.mxu0 %v1188
    %1518 = vmatpush.bf16.msra.mxu0 %v1184
    %1519 = vmatpush.bf16.msra.mxu0 %v1180
    %1520 = vmatpush.bf16.msra.mxu0 %v1176
    %1521 = vmatpush.bf16.msra.mxu0 %v1172
    %1522 = vmatpush.bf16.msra.mxu0 %v1168
    %1523 = vmatpush.bf16.msra.mxu0 %v1164
    %1524 = vmatmul.bf16.gmra.mxu0 %v542
    %v1525 = vpop.f32.mrf.mxu0
    %v1526 = vadd.f32 %v1513, %v1525
    %v1527 = vpop.f32.mrf.mxu0
    %1528 = vdwg.mxu0
    %v1529 = vmax.f32 %v1370, 0.0
    %v1530 = vmax.f32 %v1422, 0.0
    %v1531 = vmax.f32 %v1474, 0.0
    %v1532 = vmax.f32 %v1526, 0.0
    %v1533 = vpack.c.bf16 %v1529, %v1529
    %v1534 = vpack.c.bf16 %v1530, %v1530
    %v1535 = vpack.c.bf16 %v1531, %v1531
    %v1536 = vpack.c.bf16 %v1532, %v1532
    %v1537 = vld [vmem:[#allocation8] sm:$0xff]
    %v1538 = vld [vmem:[#allocation8 + $0x8] sm:$0xff]
    %v1539 = vld [vmem:[#allocation8 + $0x10] sm:$0xff]
    %v1540 = vld [vmem:[#allocation8 + $0x18] sm:$0xff]
    %v1541 = vld [vmem:[#allocation8 + $0x20] sm:$0xff]
    %v1542 = vld [vmem:[#allocation8 + $0x28] sm:$0xff]
    %v1543 = vld [vmem:[#allocation8 + $0x30] sm:$0xff]
    %v1544 = vld [vmem:[#allocation8 + $0x38] sm:$0xff]
    %v1545 = vld [vmem:[#allocation8 + $0x40] sm:$0xff]
    %v1546 = vld [vmem:[#allocation8 + $0x48] sm:$0xff]
    %v1547 = vld [vmem:[#allocation8 + $0x50] sm:$0xff]
    %v1548 = vld [vmem:[#allocation8 + $0x58] sm:$0xff]
    %v1549 = vld [vmem:[#allocation8 + $0x60] sm:$0xff]
    %v1550 = vld [vmem:[#allocation8 + $0x68] sm:$0xff]
    %v1551 = vld [vmem:[#allocation8 + $0x70] sm:$0xff]
    %v1552 = vld [vmem:[#allocation8 + $0x78] sm:$0xff]
    %v1553 = vld [vmem:[#allocation8 + $0x80] sm:$0xff]
    %v1554 = vld [vmem:[#allocation8 + $0x88] sm:$0xff]
    %v1555 = vld [vmem:[#allocation8 + $0x90] sm:$0xff]
    %v1556 = vld [vmem:[#allocation8 + $0x98] sm:$0xff]
    %v1557 = vld [vmem:[#allocation8 + $0xa0] sm:$0xff]
    %v1558 = vld [vmem:[#allocation8 + $0xa8] sm:$0xff]
    %v1559 = vld [vmem:[#allocation8 + $0xb0] sm:$0xff]
    %v1560 = vld [vmem:[#allocation8 + $0xb8] sm:$0xff]
    %v1561 = vld [vmem:[#allocation8 + $0xc0] sm:$0xff]
    %v1562 = vld [vmem:[#allocation8 + $0xc8] sm:$0xff]
    %v1563 = vld [vmem:[#allocation8 + $0xd0] sm:$0xff]
    %v1564 = vld [vmem:[#allocation8 + $0xd8] sm:$0xff]
    %v1565 = vld [vmem:[#allocation8 + $0xe0] sm:$0xff]
    %v1566 = vld [vmem:[#allocation8 + $0xe8] sm:$0xff]
    %v1567 = vld [vmem:[#allocation8 + $0xf0] sm:$0xff]
    %v1568 = vld [vmem:[#allocation8 + $0xf8] sm:$0xff]
    %v1569 = vld [vmem:[#allocation8 + $0x100] sm:$0xff]
    %v1570 = vld [vmem:[#allocation8 + $0x108] sm:$0xff]
    %v1571 = vld [vmem:[#allocation8 + $0x110] sm:$0xff]
    %v1572 = vld [vmem:[#allocation8 + $0x118] sm:$0xff]
    %v1573 = vld [vmem:[#allocation8 + $0x120] sm:$0xff]
    %v1574 = vld [vmem:[#allocation8 + $0x128] sm:$0xff]
    %v1575 = vld [vmem:[#allocation8 + $0x130] sm:$0xff]
    %v1576 = vld [vmem:[#allocation8 + $0x138] sm:$0xff]
    %v1577 = vld [vmem:[#allocation8 + $0x140] sm:$0xff]
    %v1578 = vld [vmem:[#allocation8 + $0x148] sm:$0xff]
    %v1579 = vld [vmem:[#allocation8 + $0x150] sm:$0xff]
    %v1580 = vld [vmem:[#allocation8 + $0x158] sm:$0xff]
    %v1581 = vld [vmem:[#allocation8 + $0x160] sm:$0xff]
    %v1582 = vld [vmem:[#allocation8 + $0x168] sm:$0xff]
    %v1583 = vld [vmem:[#allocation8 + $0x170] sm:$0xff]
    %v1584 = vld [vmem:[#allocation8 + $0x178] sm:$0xff]
    %v1585 = vld [vmem:[#allocation8 + $0x180] sm:$0xff]
    %v1586 = vld [vmem:[#allocation8 + $0x188] sm:$0xff]
    %v1587 = vld [vmem:[#allocation8 + $0x190] sm:$0xff]
    %v1588 = vld [vmem:[#allocation8 + $0x198] sm:$0xff]
    %v1589 = vld [vmem:[#allocation8 + $0x1a0] sm:$0xff]
    %v1590 = vld [vmem:[#allocation8 + $0x1a8] sm:$0xff]
    %v1591 = vld [vmem:[#allocation8 + $0x1b0] sm:$0xff]
    %v1592 = vld [vmem:[#allocation8 + $0x1b8] sm:$0xff]
    %v1593 = vld [vmem:[#allocation8 + $0x1c0] sm:$0xff]
    %v1594 = vld [vmem:[#allocation8 + $0x1c8] sm:$0xff]
    %v1595 = vld [vmem:[#allocation8 + $0x1d0] sm:$0xff]
    %v1596 = vld [vmem:[#allocation8 + $0x1d8] sm:$0xff]
    %v1597 = vld [vmem:[#allocation8 + $0x1e0] sm:$0xff]
    %v1598 = vld [vmem:[#allocation8 + $0x1e8] sm:$0xff]
    %v1599 = vld [vmem:[#allocation8 + $0x1f0] sm:$0xff]
    %v1600 = vld [vmem:[#allocation8 + $0x1f8] sm:$0xff]
    %v1601 = vld [vmem:[%s8] sm:$0x3]
    %v1603 = vperm.slane %v1601, 0
    %v1604 = vperm.slane %v1601, 1
    %v1671 = vunpack.c.l.b16 %v1537
    %v1672 = vunpack.c.h.b16 %v1537
    %v1673 = vunpack.c.l.b16 %v1538
    %v1674 = vunpack.c.h.b16 %v1538
    %v1675 = vunpack.c.l.b16 %v1539
    %v1676 = vunpack.c.h.b16 %v1539
    %v1677 = vunpack.c.l.b16 %v1540
    %v1678 = vunpack.c.h.b16 %v1540
    %v1679 = vunpack.c.l.b16 %v1541
    %v1680 = vunpack.c.h.b16 %v1541
    %v1681 = vunpack.c.l.b16 %v1542
    %v1682 = vunpack.c.h.b16 %v1542
    %v1683 = vunpack.c.l.b16 %v1543
    %v1684 = vunpack.c.h.b16 %v1543
    %v1685 = vunpack.c.l.b16 %v1544
    %v1686 = vunpack.c.h.b16 %v1544
    %v1687 = vunpack.c.l.b16 %v1545
    %v1688 = vunpack.c.h.b16 %v1545
    %v1689 = vunpack.c.l.b16 %v1546
    %v1690 = vunpack.c.h.b16 %v1546
    %v1691 = vunpack.c.l.b16 %v1547
    %v1692 = vunpack.c.h.b16 %v1547
    %v1693 = vunpack.c.l.b16 %v1548
    %v1694 = vunpack.c.h.b16 %v1548
    %v1695 = vunpack.c.l.b16 %v1549
    %v1696 = vunpack.c.h.b16 %v1549
    %v1697 = vunpack.c.l.b16 %v1550
    %v1698 = vunpack.c.h.b16 %v1550
    %v1699 = vunpack.c.l.b16 %v1551
    %v1700 = vunpack.c.h.b16 %v1551
    %v1701 = vunpack.c.l.b16 %v1552
    %v1702 = vunpack.c.h.b16 %v1552
    %v1703 = vunpack.c.l.b16 %v1553
    %v1704 = vunpack.c.h.b16 %v1553
    %v1705 = vunpack.c.l.b16 %v1554
    %v1706 = vunpack.c.h.b16 %v1554
    %v1707 = vunpack.c.l.b16 %v1555
    %v1708 = vunpack.c.h.b16 %v1555
    %v1709 = vunpack.c.l.b16 %v1556
    %v1710 = vunpack.c.h.b16 %v1556
    %v1711 = vunpack.c.l.b16 %v1557
    %v1712 = vunpack.c.h.b16 %v1557
    %v1713 = vunpack.c.l.b16 %v1558
    %v1714 = vunpack.c.h.b16 %v1558
    %v1715 = vunpack.c.l.b16 %v1559
    %v1716 = vunpack.c.h.b16 %v1559
    %v1717 = vunpack.c.l.b16 %v1560
    %v1718 = vunpack.c.h.b16 %v1560
    %v1719 = vunpack.c.l.b16 %v1561
    %v1720 = vunpack.c.h.b16 %v1561
    %v1721 = vunpack.c.l.b16 %v1562
    %v1722 = vunpack.c.h.b16 %v1562
    %v1723 = vunpack.c.l.b16 %v1563
    %v1724 = vunpack.c.h.b16 %v1563
    %v1725 = vunpack.c.l.b16 %v1564
    %v1726 = vunpack.c.h.b16 %v1564
    %v1727 = vunpack.c.l.b16 %v1565
    %v1728 = vunpack.c.h.b16 %v1565
    %v1729 = vunpack.c.l.b16 %v1566
    %v1730 = vunpack.c.h.b16 %v1566
    %v1731 = vunpack.c.l.b16 %v1567
    %v1732 = vunpack.c.h.b16 %v1567
    %v1733 = vunpack.c.l.b16 %v1568
    %v1734 = vunpack.c.h.b16 %v1568
    %v1735 = vunpack.c.l.b16 %v1569
    %v1736 = vunpack.c.h.b16 %v1569
    %v1737 = vunpack.c.l.b16 %v1570
    %v1738 = vunpack.c.h.b16 %v1570
    %v1739 = vunpack.c.l.b16 %v1571
    %v1740 = vunpack.c.h.b16 %v1571
    %v1741 = vunpack.c.l.b16 %v1572
    %v1742 = vunpack.c.h.b16 %v1572
    %v1743 = vunpack.c.l.b16 %v1573
    %v1744 = vunpack.c.h.b16 %v1573
    %v1745 = vunpack.c.l.b16 %v1574
    %v1746 = vunpack.c.h.b16 %v1574
    %v1747 = vunpack.c.l.b16 %v1575
    %v1748 = vunpack.c.h.b16 %v1575
    %v1749 = vunpack.c.l.b16 %v1576
    %v1750 = vunpack.c.h.b16 %v1576
    %v1751 = vunpack.c.l.b16 %v1577
    %v1752 = vunpack.c.h.b16 %v1577
    %v1753 = vunpack.c.l.b16 %v1578
    %v1754 = vunpack.c.h.b16 %v1578
    %v1755 = vunpack.c.l.b16 %v1579
    %v1756 = vunpack.c.h.b16 %v1579
    %v1757 = vunpack.c.l.b16 %v1580
    %v1758 = vunpack.c.h.b16 %v1580
    %v1759 = vunpack.c.l.b16 %v1581
    %v1760 = vunpack.c.h.b16 %v1581
    %v1761 = vunpack.c.l.b16 %v1582
    %v1762 = vunpack.c.h.b16 %v1582
    %v1763 = vunpack.c.l.b16 %v1583
    %v1764 = vunpack.c.h.b16 %v1583
    %v1765 = vunpack.c.l.b16 %v1584
    %v1766 = vunpack.c.h.b16 %v1584
    %v1767 = vunpack.c.l.b16 %v1585
    %v1768 = vunpack.c.h.b16 %v1585
    %v1769 = vunpack.c.l.b16 %v1586
    %v1770 = vunpack.c.h.b16 %v1586
    %v1771 = vunpack.c.l.b16 %v1587
    %v1772 = vunpack.c.h.b16 %v1587
    %v1773 = vunpack.c.l.b16 %v1588
    %v1774 = vunpack.c.h.b16 %v1588
    %v1775 = vunpack.c.l.b16 %v1589
    %v1776 = vunpack.c.h.b16 %v1589
    %v1777 = vunpack.c.l.b16 %v1590
    %v1778 = vunpack.c.h.b16 %v1590
    %v1779 = vunpack.c.l.b16 %v1591
    %v1780 = vunpack.c.h.b16 %v1591
    %v1781 = vunpack.c.l.b16 %v1592
    %v1782 = vunpack.c.h.b16 %v1592
    %v1783 = vunpack.c.l.b16 %v1593
    %v1784 = vunpack.c.h.b16 %v1593
    %v1785 = vunpack.c.l.b16 %v1594
    %v1786 = vunpack.c.h.b16 %v1594
    %v1787 = vunpack.c.l.b16 %v1595
    %v1788 = vunpack.c.h.b16 %v1595
    %v1789 = vunpack.c.l.b16 %v1596
    %v1790 = vunpack.c.h.b16 %v1596
    %v1791 = vunpack.c.l.b16 %v1597
    %v1792 = vunpack.c.h.b16 %v1597
    %v1793 = vunpack.c.l.b16 %v1598
    %v1794 = vunpack.c.h.b16 %v1598
    %v1795 = vunpack.c.l.b16 %v1599
    %v1796 = vunpack.c.h.b16 %v1599
    %v1797 = vunpack.c.l.b16 %v1600
    %v1798 = vunpack.c.h.b16 %v1600
    %v1799 = vpack.c.b16 %v1673, %v1671
    %v1800 = vpack.c.b16 %v1674, %v1672
    %v1801 = vpack.c.b16 %v1677, %v1675
    %v1802 = vpack.c.b16 %v1678, %v1676
    %v1803 = vpack.c.b16 %v1681, %v1679
    %v1804 = vpack.c.b16 %v1682, %v1680
    %v1805 = vpack.c.b16 %v1685, %v1683
    %v1806 = vpack.c.b16 %v1686, %v1684
    %v1807 = vpack.c.b16 %v1689, %v1687
    %v1808 = vpack.c.b16 %v1690, %v1688
    %v1809 = vpack.c.b16 %v1693, %v1691
    %v1810 = vpack.c.b16 %v1694, %v1692
    %v1811 = vpack.c.b16 %v1697, %v1695
    %v1812 = vpack.c.b16 %v1698, %v1696
    %v1813 = vpack.c.b16 %v1701, %v1699
    %v1814 = vpack.c.b16 %v1702, %v1700
    %v1815 = vpack.c.b16 %v1705, %v1703
    %v1816 = vpack.c.b16 %v1706, %v1704
    %v1817 = vpack.c.b16 %v1709, %v1707
    %v1818 = vpack.c.b16 %v1710, %v1708
    %v1819 = vpack.c.b16 %v1713, %v1711
    %v1820 = vpack.c.b16 %v1714, %v1712
    %v1821 = vpack.c.b16 %v1717, %v1715
    %v1822 = vpack.c.b16 %v1718, %v1716
    %v1823 = vpack.c.b16 %v1721, %v1719
    %v1824 = vpack.c.b16 %v1722, %v1720
    %v1825 = vpack.c.b16 %v1725, %v1723
    %v1826 = vpack.c.b16 %v1726, %v1724
    %v1827 = vpack.c.b16 %v1729, %v1727
    %v1828 = vpack.c.b16 %v1730, %v1728
    %v1829 = vpack.c.b16 %v1733, %v1731
    %v1830 = vpack.c.b16 %v1734, %v1732
    %v1831 = vpack.c.b16 %v1737, %v1735
    %v1832 = vpack.c.b16 %v1738, %v1736
    %v1833 = vpack.c.b16 %v1741, %v1739
    %v1834 = vpack.c.b16 %v1742, %v1740
    %v1835 = vpack.c.b16 %v1745, %v1743
    %v1836 = vpack.c.b16 %v1746, %v1744
    %v1837 = vpack.c.b16 %v1749, %v1747
    %v1838 = vpack.c.b16 %v1750, %v1748
    %v1839 = vpack.c.b16 %v1753, %v1751
    %v1840 = vpack.c.b16 %v1754, %v1752
    %v1841 = vpack.c.b16 %v1757, %v1755
    %v1842 = vpack.c.b16 %v1758, %v1756
    %v1843 = vpack.c.b16 %v1761, %v1759
    %v1844 = vpack.c.b16 %v1762, %v1760
    %v1845 = vpack.c.b16 %v1765, %v1763
    %v1846 = vpack.c.b16 %v1766, %v1764
    %v1847 = vpack.c.b16 %v1769, %v1767
    %v1848 = vpack.c.b16 %v1770, %v1768
    %v1849 = vpack.c.b16 %v1773, %v1771
    %v1850 = vpack.c.b16 %v1774, %v1772
    %v1851 = vpack.c.b16 %v1777, %v1775
    %v1852 = vpack.c.b16 %v1778, %v1776
    %v1853 = vpack.c.b16 %v1781, %v1779
    %v1854 = vpack.c.b16 %v1782, %v1780
    %v1855 = vpack.c.b16 %v1785, %v1783
    %v1856 = vpack.c.b16 %v1786, %v1784
    %v1857 = vpack.c.b16 %v1789, %v1787
    %v1858 = vpack.c.b16 %v1790, %v1788
    %v1859 = vpack.c.b16 %v1793, %v1791
    %v1860 = vpack.c.b16 %v1794, %v1792
    %v1861 = vpack.c.b16 %v1797, %v1795
    %v1862 = vpack.c.b16 %v1798, %v1796
    %1927 = vmatpush.bf16.msra.mxu0 %v1813
    %1928 = vmatpush.bf16.msra.mxu0 %v1811
    %1929 = vmatpush.bf16.msra.mxu0 %v1809
    %1930 = vmatpush.bf16.msra.mxu0 %v1807
    %1931 = vmatpush.bf16.msra.mxu0 %v1805
    %1932 = vmatpush.bf16.msra.mxu0 %v1803
    %1933 = vmatpush.bf16.msra.mxu0 %v1801
    %1934 = vmatpush.bf16.msra.mxu0 %v1799
    %1935 = vmatmul.bf16.gmra.mxu0 %v1533
    %v1936 = vpop.f32.mrf.mxu0
    %v1937 = vadd.f32 %v1603, %v1936
    %v1938 = vpop.f32.mrf.mxu0
    %1939 = vdwg.mxu0
    %1940 = vmatpush.bf16.msra.mxu0 %v1829
    %1941 = vmatpush.bf16.msra.mxu0 %v1827
    %1942 = vmatpush.bf16.msra.mxu0 %v1825
    %1943 = vmatpush.bf16.msra.mxu0 %v1823
    %1944 = vmatpush.bf16.msra.mxu0 %v1821
    %1945 = vmatpush.bf16.msra.mxu0 %v1819
    %1946 = vmatpush.bf16.msra.mxu0 %v1817
    %1947 = vmatpush.bf16.msra.mxu0 %v1815
    %1948 = vmatmul.bf16.gmra.mxu0 %v1534
    %v1949 = vpop.f32.mrf.mxu0
    %v1950 = vadd.f32 %v1937, %v1949
    %v1951 = vpop.f32.mrf.mxu0
    %1952 = vdwg.mxu0
    %1953 = vmatpush.bf16.msra.mxu0 %v1845
    %1954 = vmatpush.bf16.msra.mxu0 %v1843
    %1955 = vmatpush.bf16.msra.mxu0 %v1841
    %1956 = vmatpush.bf16.msra.mxu0 %v1839
    %1957 = vmatpush.bf16.msra.mxu0 %v1837
    %1958 = vmatpush.bf16.msra.mxu0 %v1835
    %1959 = vmatpush.bf16.msra.mxu0 %v1833
    %1960 = vmatpush.bf16.msra.mxu0 %v1831
    %1961 = vmatmul.bf16.gmra.mxu0 %v1535
    %v1962 = vpop.f32.mrf.mxu0
    %v1963 = vadd.f32 %v1950, %v1962
    %v1964 = vpop.f32.mrf.mxu0
    %1965 = vdwg.mxu0
    %1966 = vmatpush.bf16.msra.mxu0 %v1861
    %1967 = vmatpush.bf16.msra.mxu0 %v1859
    %1968 = vmatpush.bf16.msra.mxu0 %v1857
    %1969 = vmatpush.bf16.msra.mxu0 %v1855
    %1970 = vmatpush.bf16.msra.mxu0 %v1853
    %1971 = vmatpush.bf16.msra.mxu0 %v1851
    %1972 = vmatpush.bf16.msra.mxu0 %v1849
    %1973 = vmatpush.bf16.msra.mxu0 %v1847
    %1974 = vmatmul.bf16.gmra.mxu0 %v1536
    %v1975 = vpop.f32.mrf.mxu0
    %v1976 = vadd.f32 %v1963, %v1975
    %v1977 = vpop.f32.mrf.mxu0
    %1978 = vdwg.mxu0
    %1979 = vmatpush.bf16.msra.mxu0 %v1814
    %1980 = vmatpush.bf16.msra.mxu0 %v1812
    %1981 = vmatpush.bf16.msra.mxu0 %v1810
    %1982 = vmatpush.bf16.msra.mxu0 %v1808
    %1983 = vmatpush.bf16.msra.mxu0 %v1806
    %1984 = vmatpush.bf16.msra.mxu0 %v1804
    %1985 = vmatpush.bf16.msra.mxu0 %v1802
    %1986 = vmatpush.bf16.msra.mxu0 %v1800
    %1987 = vmatmul.bf16.gmra.mxu0 %v1533
    %v1988 = vpop.f32.mrf.mxu0
    %v1989 = vadd.f32 %v1604, %v1988
    %v1990 = vpop.f32.mrf.mxu0
    %1991 = vdwg.mxu0
    %1992 = vmatpush.bf16.msra.mxu0 %v1830
    %1993 = vmatpush.bf16.msra.mxu0 %v1828
    %1994 = vmatpush.bf16.msra.mxu0 %v1826
    %1995 = vmatpush.bf16.msra.mxu0 %v1824
    %1996 = vmatpush.bf16.msra.mxu0 %v1822
    %1997 = vmatpush.bf16.msra.mxu0 %v1820
    %1998 = vmatpush.bf16.msra.mxu0 %v1818
    %1999 = vmatpush.bf16.msra.mxu0 %v1816
    %2000 = vmatmul.bf16.gmra.mxu0 %v1534
    %v2001 = vpop.f32.mrf.mxu0
    %v2002 = vadd.f32 %v1989, %v2001
    %v2003 = vpop.f32.mrf.mxu0
    %2004 = vdwg.mxu0
    %2005 = vmatpush.bf16.msra.mxu0 %v1846
    %2006 = vmatpush.bf16.msra.mxu0 %v1844
    %2007 = vmatpush.bf16.msra.mxu0 %v1842
    %2008 = vmatpush.bf16.msra.mxu0 %v1840
    %2009 = vmatpush.bf16.msra.mxu0 %v1838
    %2010 = vmatpush.bf16.msra.mxu0 %v1836
    %2011 = vmatpush.bf16.msra.mxu0 %v1834
    %2012 = vmatpush.bf16.msra.mxu0 %v1832
    %2013 = vmatmul.bf16.gmra.mxu0 %v1535
    %v2014 = vpop.f32.mrf.mxu0
    %v2015 = vadd.f32 %v2002, %v2014
    %v2016 = vpop.f32.mrf.mxu0
    %2017 = vdwg.mxu0
    %2018 = vmatpush.bf16.msra.mxu0 %v1862
    %2019 = vmatpush.bf16.msra.mxu0 %v1860
    %2020 = vmatpush.bf16.msra.mxu0 %v1858
    %2021 = vmatpush.bf16.msra.mxu0 %v1856
    %2022 = vmatpush.bf16.msra.mxu0 %v1854
    %2023 = vmatpush.bf16.msra.mxu0 %v1852
    %2024 = vmatpush.bf16.msra.mxu0 %v1850
    %2025 = vmatpush.bf16.msra.mxu0 %v1848
    %2026 = vmatmul.bf16.gmra.mxu0 %v1536
    %v2027 = vpop.f32.mrf.mxu0
    %v2028 = vadd.f32 %v2015, %v2027
    %v2029 = vpop.f32.mrf.mxu0
    %2030 = vdwg.mxu0
    %v2031 = vmax.f32 %v1976, 0.0
    %v2032 = vmax.f32 %v2028, 0.0
    %v2033 = vpack.c.bf16 %v2031, %v2031
    %v2034 = vpack.c.bf16 %v2032, %v2032
    %v2035 = vld [vmem:[#allocation10] sm:$0xf]
    %v2036 = vld [vmem:[#allocation10 + $0x4] sm:$0xf]
    %v2037 = vld [vmem:[#allocation10 + $0x8] sm:$0xf]
    %v2038 = vld [vmem:[#allocation10 + $0xc] sm:$0xf]
    %v2039 = vld [vmem:[#allocation10 + $0x10] sm:$0xf]
    %v2040 = vld [vmem:[#allocation10 + $0x14] sm:$0xf]
    %v2041 = vld [vmem:[#allocation10 + $0x18] sm:$0xf]
    %v2042 = vld [vmem:[#allocation10 + $0x1c] sm:$0xf]
    %v2043 = vld [vmem:[#allocation10 + $0x20] sm:$0xf]
    %v2044 = vld [vmem:[#allocation10 + $0x24] sm:$0xf]
    %v2045 = vld [vmem:[#allocation10 + $0x28] sm:$0xf]
    %v2046 = vld [vmem:[#allocation10 + $0x2c] sm:$0xf]
    %v2047 = vld [vmem:[#allocation10 + $0x30] sm:$0xf]
    %v2048 = vld [vmem:[#allocation10 + $0x34] sm:$0xf]
    %v2049 = vld [vmem:[#allocation10 + $0x38] sm:$0xf]
    %v2050 = vld [vmem:[#allocation10 + $0x3c] sm:$0xf]
    %v2051 = vld [vmem:[#allocation10 + $0x40] sm:$0xf]
    %v2052 = vld [vmem:[#allocation10 + $0x44] sm:$0xf]
    %v2053 = vld [vmem:[#allocation10 + $0x48] sm:$0xf]
    %v2054 = vld [vmem:[#allocation10 + $0x4c] sm:$0xf]
    %v2055 = vld [vmem:[#allocation10 + $0x50] sm:$0xf]
    %v2056 = vld [vmem:[#allocation10 + $0x54] sm:$0xf]
    %v2057 = vld [vmem:[#allocation10 + $0x58] sm:$0xf]
    %v2058 = vld [vmem:[#allocation10 + $0x5c] sm:$0xf]
    %v2059 = vld [vmem:[#allocation10 + $0x60] sm:$0xf]
    %v2060 = vld [vmem:[#allocation10 + $0x64] sm:$0xf]
    %v2061 = vld [vmem:[#allocation10 + $0x68] sm:$0xf]
    %v2062 = vld [vmem:[#allocation10 + $0x6c] sm:$0xf]
    %v2063 = vld [vmem:[#allocation10 + $0x70] sm:$0xf]
    %v2064 = vld [vmem:[#allocation10 + $0x74] sm:$0xf]
    %v2065 = vld [vmem:[#allocation10 + $0x78] sm:$0xf]
    %v2066 = vld [vmem:[#allocation10 + $0x7c] sm:$0xf]
    %v2067 = vld [vmem:[%s10] sm:$0x1]
    %v2069 = vperm.slane %v2067, 0
    %v2103 = vunpack.c.l.b16 %v2035
    %v2104 = vunpack.c.l.b16 %v2036
    %v2105 = vunpack.c.l.b16 %v2037
    %v2106 = vunpack.c.l.b16 %v2038
    %v2107 = vunpack.c.l.b16 %v2039
    %v2108 = vunpack.c.l.b16 %v2040
    %v2109 = vunpack.c.l.b16 %v2041
    %v2110 = vunpack.c.l.b16 %v2042
    %v2111 = vunpack.c.l.b16 %v2043
    %v2112 = vunpack.c.l.b16 %v2044
    %v2113 = vunpack.c.l.b16 %v2045
    %v2114 = vunpack.c.l.b16 %v2046
    %v2115 = vunpack.c.l.b16 %v2047
    %v2116 = vunpack.c.l.b16 %v2048
    %v2117 = vunpack.c.l.b16 %v2049
    %v2118 = vunpack.c.l.b16 %v2050
    %v2119 = vunpack.c.l.b16 %v2051
    %v2120 = vunpack.c.l.b16 %v2052
    %v2121 = vunpack.c.l.b16 %v2053
    %v2122 = vunpack.c.l.b16 %v2054
    %v2123 = vunpack.c.l.b16 %v2055
    %v2124 = vunpack.c.l.b16 %v2056
    %v2125 = vunpack.c.l.b16 %v2057
    %v2126 = vunpack.c.l.b16 %v2058
    %v2127 = vunpack.c.l.b16 %v2059
    %v2128 = vunpack.c.l.b16 %v2060
    %v2129 = vunpack.c.l.b16 %v2061
    %v2130 = vunpack.c.l.b16 %v2062
    %v2131 = vunpack.c.l.b16 %v2063
    %v2132 = vunpack.c.l.b16 %v2064
    %v2133 = vunpack.c.l.b16 %v2065
    %v2134 = vunpack.c.l.b16 %v2066
    %v2135 = vpack.c.b16 %v2104, %v2103
    %v2136 = vpack.c.b16 %v2106, %v2105
    %v2137 = vpack.c.b16 %v2108, %v2107
    %v2138 = vpack.c.b16 %v2110, %v2109
    %v2139 = vpack.c.b16 %v2112, %v2111
    %v2140 = vpack.c.b16 %v2114, %v2113
    %v2141 = vpack.c.b16 %v2116, %v2115
    %v2142 = vpack.c.b16 %v2118, %v2117
    %v2143 = vpack.c.b16 %v2120, %v2119
    %v2144 = vpack.c.b16 %v2122, %v2121
    %v2145 = vpack.c.b16 %v2124, %v2123
    %v2146 = vpack.c.b16 %v2126, %v2125
    %v2147 = vpack.c.b16 %v2128, %v2127
    %v2148 = vpack.c.b16 %v2130, %v2129
    %v2149 = vpack.c.b16 %v2132, %v2131
    %v2150 = vpack.c.b16 %v2134, %v2133
    %2167 = vmatpush.bf16.msra.mxu0 %v2142
    %2168 = vmatpush.bf16.msra.mxu0 %v2141
    %2169 = vmatpush.bf16.msra.mxu0 %v2140
    %2170 = vmatpush.bf16.msra.mxu0 %v2139
    %2171 = vmatpush.bf16.msra.mxu0 %v2138
    %2172 = vmatpush.bf16.msra.mxu0 %v2137
    %2173 = vmatpush.bf16.msra.mxu0 %v2136
    %2174 = vmatpush.bf16.msra.mxu0 %v2135
    %2175 = vmatmul.bf16.gmra.mxu0 %v2033
    %v2176 = vpop.f32.mrf.mxu0
    %v2177 = vadd.f32 %v2069, %v2176
    %v2178 = vpop.f32.mrf.mxu0
    %2179 = vdwg.mxu0
    %2180 = vmatpush.bf16.msra.mxu0 %v2150
    %2181 = vmatpush.bf16.msra.mxu0 %v2149
    %2182 = vmatpush.bf16.msra.mxu0 %v2148
    %2183 = vmatpush.bf16.msra.mxu0 %v2147
    %2184 = vmatpush.bf16.msra.mxu0 %v2146
    %2185 = vmatpush.bf16.msra.mxu0 %v2145
    %2186 = vmatpush.bf16.msra.mxu0 %v2144
    %2187 = vmatpush.bf16.msra.mxu0 %v2143
    %2188 = vmatmul.bf16.gmra.mxu0 %v2034
    %v2189 = vpop.f32.mrf.mxu0
    %v2190 = vadd.f32 %v2177, %v2189
    %v2191 = vpop.f32.mrf.mxu0
    %2192 = vdwg.mxu0
    %2193 = vst [vmem:[#allocation11] sm:$0xff] %v2190
    // Predicated region
    $region66: #{dqn_latefusion_forward.1} parent=1 // pred_check
      _
    $region67: #{dqn_latefusion_forward.1} parent=1 // pred_check_branch
      %2195 = sbr.rel (0) target = $region69
    $region68: #{dqn_latefusion_forward.1} parent=1 // pred_region
      %2197 = vsyncadd [#allocation4], 0
      %s2199 = sshll.u32 [#allocation11], 4
      %s2200 = int_to_ptr.vmem [resolvable:$true] %s2199
      %s2201 = sshll.u32 %s11, 4
      %s2202 = int_to_ptr.hbm [resolvable:$true] %s2201
      %2204 = dma.vmem_to_hbm [thread:$0]  %s2200, 128, %s2202, [#allocation4]
    $region69: #{dqn_latefusion_forward.1} parent=1 // pred_fallthru
      _
    // Predicated region
    $region70: #{dqn_latefusion_forward.1} parent=1 // pred_check
      _
    $region71: #{dqn_latefusion_forward.1} parent=1 // pred_check_branch
      %2206 = sbr.rel (0) target = $region73
    $region72: #{dqn_latefusion_forward.1} parent=1 // pred_region
      %2208 = dma.done [#allocation4], 128
    $region73: #{dqn_latefusion_forward.1} parent=1 // pred_fallthru
      _
    %2209 = vsyncpa [#allocation3], 1
    %2210 = vsyncpa [#allocation6], 1
    %2211 = vsyncpa [#allocation9], 1
    %2212 = vsyncpa [#allocation4], 1

</llo_original>
